<compile_context>
chip_gen: v6e
topology: v6e:2x2x1
jax: 0.10.0
libtpu: 0.0.40
codegen_flags: <defaults>
</compile_context>

<pallas_src>
import jax
import jax.numpy as jnp
from jax.experimental import pallas as pl
from jax.experimental.pallas import tpu as pltpu

THETAS_DIM = 1


def _round_up(n, m):
    return -(-n // m) * m


def _nbeats_kernel(x_ref, w_in_ref, w_back_ref, aux_ref, out_ref):
    NB, H, D = w_back_ref.shape          # w_back: (NB, H, D)

    residual = x_ref[...]                          # (TB, D) f32
    fsum = jnp.zeros(out_ref.shape, jnp.float32)   # (TB, T=1)

    # Static unroll over the NB blocks; every parameter is VMEM-resident and
    # indexed with static i / 8-aligned static slices (no dynamic DMA).
    for i in range(NB):
        aux = aux_ref[i]                 # (6, L) f32
        b1 = aux[0:1, :H]                # (1, H)
        b2 = aux[1:2, :H]
        b3 = aux[2:3, :H]
        bb = aux[3:4, :D]                # (1, D)
        wf = aux[4:5, :H]                # (1, H)  forecast weight vector
        bf = aux[5:6, 0:1]               # (1, 1)  forecast bias

        w1 = w_in_ref[i, 0:D, :]                 # (D, H) bf16
        w2 = w_in_ref[i, D:D + H, :]             # (H, H) bf16
        w3 = w_in_ref[i, D + H:D + 2 * H, :]     # (H, H) bf16

        # MXU dots in bf16 with f32 accumulation; bias add / relu on the VPU.
        h = jnp.maximum(
            jnp.dot(residual.astype(jnp.bfloat16), w1,
                    preferred_element_type=jnp.float32) + b1, 0.0)
        h = jnp.maximum(
            jnp.dot(h.astype(jnp.bfloat16), w2,
                    preferred_element_type=jnp.float32) + b2, 0.0)
        h = jnp.maximum(
            jnp.dot(h.astype(jnp.bfloat16), w3,
                    preferred_element_type=jnp.float32) + b3, 0.0)

        # Backcast head on the MXU (N = D), f32 bias add.
        backcast = (jnp.dot(h.astype(jnp.bfloat16), w_back_ref[i],
                            preferred_element_type=jnp.float32) + bb)

        # Forecast head (thetas_dim == 1) on VPU multiply + XLU lane-reduce,
        # keeping it in f32 and off the serial MXU chain.
        forecast = jnp.sum(h * wf, axis=-1, keepdims=True) + bf

        residual = residual - backcast
        fsum = fsum + forecast

    # (TB, 1) output is a masked 1-lane store; negligible at these sizes.
    out_ref[...] = fsum


def pack_params(raw):
    """Pack per-block parameters into 3 DMA-friendly slabs."""
    NB, D, H = raw["w1"].shape
    T = raw["wf"].shape[-1]
    # TODO(synk): generalize the VPU forecast head for thetas_dim > 1 (would
    # fall back to an (H, T) MXU matmul for the forecast).
    assert T == 1, "packed/VPU forecast path assumes thetas_dim == 1"
    L = max(D, H)

    def row(a):                         # (NB, k) -> (NB, L), zero-padded lanes
        return jnp.pad(a, ((0, 0), (0, L - a.shape[-1])))

    aux = jnp.stack([
        row(raw["b1"][:, 0, :]),        # b1 (NB, H)
        row(raw["b2"][:, 0, :]),        # b2
        row(raw["b3"][:, 0, :]),        # b3
        row(raw["bb"][:, 0, :]),        # bb (NB, D)
        row(raw["wf"][:, :, 0]),        # forecast weight vector (NB, H)
        row(raw["bf"][:, 0, :]),        # bf (NB, 1)
    ], axis=1).astype(jnp.float32)      # (NB, 6, L)

    return {
        "w_in": jnp.concatenate(
            [raw["w1"], raw["w2"], raw["w3"]], axis=1).astype(jnp.bfloat16),
        "w_back": raw["wb"].astype(jnp.bfloat16),   # (NB, H, D)
        "aux": aux,
    }


def nbeats_forward(x, packed, *, block_batch=128):
    """x: (B, W, F) float32.  packed: output of pack_params."""
    B, W, F = x.shape
    D = W * F
    T = THETAS_DIM
    NB, H, D2 = packed["w_back"].shape
    assert D2 == D
    L = packed["aux"].shape[-1]

    x_flat = x.reshape(B, D).astype(jnp.float32)

    # Batch tile: multiple of 8, capped at 128 for f32 activations (vreg file
    # budget per the perf review); pad B up to a multiple of TB.
    TB = min(block_batch, _round_up(B, 8))
    Bp = _round_up(B, TB)
    if Bp != B:
        x_flat = jnp.pad(x_flat, ((0, Bp - B), (0, 0)))

    grid = (Bp // TB,)

    out = pl.pallas_call(
        _nbeats_kernel,
        out_shape=jax.ShapeDtypeStruct((Bp, T), jnp.float32),
        grid_spec=pltpu.PrefetchScalarGridSpec(
            num_scalar_prefetch=0,
            grid=grid,
            in_specs=[
                # x is tiled over the batch; weights use a constant index_map
                # so they are DMA'd once and stay VMEM-resident across tiles.
                pl.BlockSpec((TB, D), lambda i: (i, 0)),
                pl.BlockSpec((NB, D + 2 * H, H), lambda i: (0, 0, 0)),
                pl.BlockSpec((NB, H, D), lambda i: (0, 0, 0)),
                pl.BlockSpec((NB, 6, L), lambda i: (0, 0, 0)),
            ],
            out_specs=pl.BlockSpec((TB, T), lambda i: (i, 0)),
        ),
        compiler_params=pltpu.CompilerParams(
            dimension_semantics=("parallel",)),
    )(x_flat, packed["w_in"], packed["w_back"], packed["aux"])

    return out[:B, 0]   # (B,)


def init_params(key, num_blocks, input_dim, hidden_units, thetas_dim):
    """Deterministic synthetic parameters, stacked over blocks (raw layout)."""
    keys = jax.random.split(key, 10)
    s = 0.1
    D, H, T = input_dim, hidden_units, thetas_dim
    return {
        "w1": s * jax.random.normal(keys[0], (num_blocks, D, H), jnp.float32),
        "b1": s * jax.random.normal(keys[1], (num_blocks, 1, H), jnp.float32),
        "w2": s * jax.random.normal(keys[2], (num_blocks, H, H), jnp.float32),
        "b2": s * jax.random.normal(keys[3], (num_blocks, 1, H), jnp.float32),
        "w3": s * jax.random.normal(keys[4], (num_blocks, H, H), jnp.float32),
        "b3": s * jax.random.normal(keys[5], (num_blocks, 1, H), jnp.float32),
        # theta layer stored pre-split into backcast / forecast heads
        "wb": s * jax.random.normal(keys[6], (num_blocks, H, D), jnp.float32),
        "bb": s * jax.random.normal(keys[7], (num_blocks, 1, D), jnp.float32),
        "wf": s * jax.random.normal(keys[8], (num_blocks, H, T), jnp.float32),
        "bf": s * jax.random.normal(keys[9], (num_blocks, 1, T), jnp.float32),
    }


def nbeats_reference(x, params):
    """Pure-JAX f32 reference (mirrors the PyTorch block forward exactly)."""
    B, W, F = x.shape
    D = W * F
    residual = x.reshape(B, D).astype(jnp.float32)
    fsum = jnp.zeros((B, THETAS_DIM), jnp.float32)
    NB = params["w1"].shape[0]
    for i in range(NB):
        h = jax.nn.relu(residual @ params["w1"][i] + params["b1"][i])
        h = jax.nn.relu(h @ params["w2"][i] + params["b2"][i])
        h = jax.nn.relu(h @ params["w3"][i] + params["b3"][i])
        backcast = h @ params["wb"][i] + params["bb"][i]
        forecast = h @ params["wf"][i] + params["bf"][i]
        residual = residual - backcast
        fsum = fsum + forecast
    return fsum.squeeze(-1)


if __name__ == "__main__":
    # Model config (small): window_size=8, feature_dim=4, stacks=2,
    # blocks_per_stack=3, hidden_units=32, thetas_dim=1.
    window_size, feature_dim = 8, 4
    stacks, blocks_per_stack = 2, 3
    hidden_units, thetas_dim = 32, THETAS_DIM
    batch = 8

    input_dim = window_size * feature_dim
    num_blocks = stacks * blocks_per_stack

    key = jax.random.PRNGKey(0)
    kx, kp = jax.random.split(key)
    x = jax.random.normal(kx, (batch, window_size, feature_dim), jnp.float32)
    raw_params = init_params(kp, num_blocks, input_dim, hidden_units, thetas_dim)
    packed_params = pack_params(raw_params)

    out = nbeats_forward(x, packed_params)
    out = jax.block_until_ready(out)

    ref = nbeats_reference(x, raw_params)
    assert out.shape == (batch,)
    # Tolerance relaxed vs. the f32-only version because the MXU dots now use
    # bf16 operands (f32 accumulation); observed error is ~1e-3 at these sizes.
    assert jnp.allclose(out, ref, atol=2e-2, rtol=2e-2), (out, ref)

    print("KERNEL_OK")
</pallas_src>

<mosaic_0001>
module attributes {stable_mosaic.version = 11 : i64} {
  func.func @_nbeats_kernel(%arg0: i32, %arg1: memref<8x32xf32, #tpu.memory_space<vmem>>, %arg2: memref<6x96x32xbf16, #tpu.memory_space<vmem>>, %arg3: memref<6x32x32xbf16, #tpu.memory_space<vmem>>, %arg4: memref<6x6x32xf32, #tpu.memory_space<vmem>>, %arg5: memref<8x1xf32, #tpu.memory_space<vmem>>) attributes {dimension_semantics = [#tpu.dimension_semantics<parallel>], iteration_bounds = array<i64: 1>, scalar_prefetch = 0 : i64, scratch_operands = 0 : i64, tpu.core_type = #tpu.core_type<tc>, window_params = [{transform_indices = @transform_0, window_bounds = array<i64: 8, 32>}, {pipeline_mode = #tpu.pipeline_mode<synchronous>, transform_indices = @transform_1, window_bounds = array<i64: 6, 96, 32>}, {pipeline_mode = #tpu.pipeline_mode<synchronous>, transform_indices = @transform_2, window_bounds = array<i64: 6, 32, 32>}, {pipeline_mode = #tpu.pipeline_mode<synchronous>, transform_indices = @transform_3, window_bounds = array<i64: 6, 6, 32>}, {transform_indices = @transform_4, window_bounds = array<i64: 8, 1>}]} {
    %c0 = arith.constant 0 : index
    %c0_0 = arith.constant 0 : index
    %0 = vector.load %arg1[%c0, %c0_0] : memref<8x32xf32, #tpu.memory_space<vmem>>, vector<8x32xf32>
    %cst = arith.constant 0.000000e+00 : f32
    %1 = vector.broadcast %cst : f32 to vector<8x1xf32>
    %c0_1 = arith.constant 0 : index
    %c0_2 = arith.constant 0 : index
    %c0_3 = arith.constant 0 : index
    %2 = vector.load %arg4[%c0_1, %c0_2, %c0_3] : memref<6x6x32xf32, #tpu.memory_space<vmem>>, vector<1x6x32xf32>
    %3 = vector.shape_cast %2 : vector<1x6x32xf32> to vector<6x32xf32>
    %4 = vector.extract_strided_slice %3 {offsets = [0, 0], sizes = [1, 32], strides = [1, 1]} : vector<6x32xf32> to vector<1x32xf32>
    %5 = vector.extract_strided_slice %3 {offsets = [1, 0], sizes = [1, 32], strides = [1, 1]} : vector<6x32xf32> to vector<1x32xf32>
    %6 = vector.extract_strided_slice %3 {offsets = [2, 0], sizes = [1, 32], strides = [1, 1]} : vector<6x32xf32> to vector<1x32xf32>
    %7 = vector.extract_strided_slice %3 {offsets = [3, 0], sizes = [1, 32], strides = [1, 1]} : vector<6x32xf32> to vector<1x32xf32>
    %8 = vector.extract_strided_slice %3 {offsets = [4, 0], sizes = [1, 32], strides = [1, 1]} : vector<6x32xf32> to vector<1x32xf32>
    %9 = vector.extract_strided_slice %3 {offsets = [5, 0], sizes = [1, 1], strides = [1, 1]} : vector<6x32xf32> to vector<1x1xf32>
    %c0_4 = arith.constant 0 : index
    %c0_5 = arith.constant 0 : index
    %c0_6 = arith.constant 0 : index
    %10 = vector.load %arg2[%c0_4, %c0_5, %c0_6] : memref<6x96x32xbf16, #tpu.memory_space<vmem>>, vector<1x32x32xbf16>
    %11 = vector.shape_cast %10 : vector<1x32x32xbf16> to vector<32x32xbf16>
    %c0_7 = arith.constant 0 : index
    %c32 = arith.constant 32 : index
    %c0_8 = arith.constant 0 : index
    %12 = vector.load %arg2[%c0_7, %c32, %c0_8] : memref<6x96x32xbf16, #tpu.memory_space<vmem>>, vector<1x32x32xbf16>
    %13 = vector.shape_cast %12 : vector<1x32x32xbf16> to vector<32x32xbf16>
    %c0_9 = arith.constant 0 : index
    %c64 = arith.constant 64 : index
    %c0_10 = arith.constant 0 : index
    %14 = vector.load %arg2[%c0_9, %c64, %c0_10] : memref<6x96x32xbf16, #tpu.memory_space<vmem>>, vector<1x32x32xbf16>
    %15 = vector.shape_cast %14 : vector<1x32x32xbf16> to vector<32x32xbf16>
    %16 = arith.truncf %0 : vector<8x32xf32> to vector<8x32xbf16>
    %cst_11 = arith.constant dense<0.000000e+00> : vector<8x32xf32>
    %17 = tpu.matmul %16, %11, %cst_11 {dimension_numbers = #tpu.dot_dimension_numbers<[1], [0], [0], [1], [0, 0, 1, 1], [], []>} : vector<8x32xbf16>, vector<32x32xbf16>, vector<8x32xf32> -> vector<8x32xf32>
    %18 = vector.broadcast %4 : vector<1x32xf32> to vector<8x32xf32>
    %19 = arith.addf %17, %18 : vector<8x32xf32>
    %cst_12 = arith.constant 0.000000e+00 : f32
    %20 = vector.broadcast %cst_12 : f32 to vector<8x32xf32>
    %21 = arith.maximumf %19, %20 : vector<8x32xf32>
    %22 = arith.truncf %21 : vector<8x32xf32> to vector<8x32xbf16>
    %cst_13 = arith.constant dense<0.000000e+00> : vector<8x32xf32>
    %23 = tpu.matmul %22, %13, %cst_13 {dimension_numbers = #tpu.dot_dimension_numbers<[1], [0], [0], [1], [0, 0, 1, 1], [], []>} : vector<8x32xbf16>, vector<32x32xbf16>, vector<8x32xf32> -> vector<8x32xf32>
    %24 = vector.broadcast %5 : vector<1x32xf32> to vector<8x32xf32>
    %25 = arith.addf %23, %24 : vector<8x32xf32>
    %cst_14 = arith.constant 0.000000e+00 : f32
    %26 = vector.broadcast %cst_14 : f32 to vector<8x32xf32>
    %27 = arith.maximumf %25, %26 : vector<8x32xf32>
    %28 = arith.truncf %27 : vector<8x32xf32> to vector<8x32xbf16>
    %cst_15 = arith.constant dense<0.000000e+00> : vector<8x32xf32>
    %29 = tpu.matmul %28, %15, %cst_15 {dimension_numbers = #tpu.dot_dimension_numbers<[1], [0], [0], [1], [0, 0, 1, 1], [], []>} : vector<8x32xbf16>, vector<32x32xbf16>, vector<8x32xf32> -> vector<8x32xf32>
    %30 = vector.broadcast %6 : vector<1x32xf32> to vector<8x32xf32>
    %31 = arith.addf %29, %30 : vector<8x32xf32>
    %cst_16 = arith.constant 0.000000e+00 : f32
    %32 = vector.broadcast %cst_16 : f32 to vector<8x32xf32>
    %33 = arith.maximumf %31, %32 : vector<8x32xf32>
    %34 = arith.truncf %33 : vector<8x32xf32> to vector<8x32xbf16>
    %c0_17 = arith.constant 0 : index
    %c0_18 = arith.constant 0 : index
    %c0_19 = arith.constant 0 : index
    %35 = vector.load %arg3[%c0_17, %c0_18, %c0_19] : memref<6x32x32xbf16, #tpu.memory_space<vmem>>, vector<1x32x32xbf16>
    %36 = vector.shape_cast %35 : vector<1x32x32xbf16> to vector<32x32xbf16>
    %cst_20 = arith.constant dense<0.000000e+00> : vector<8x32xf32>
    %37 = tpu.matmul %34, %36, %cst_20 {dimension_numbers = #tpu.dot_dimension_numbers<[1], [0], [0], [1], [0, 0, 1, 1], [], []>} : vector<8x32xbf16>, vector<32x32xbf16>, vector<8x32xf32> -> vector<8x32xf32>
    %38 = vector.broadcast %7 : vector<1x32xf32> to vector<8x32xf32>
    %39 = arith.addf %37, %38 : vector<8x32xf32>
    %40 = vector.broadcast %8 : vector<1x32xf32> to vector<8x32xf32>
    %41 = arith.mulf %33, %40 : vector<8x32xf32>
    %cst_21 = arith.constant dense<0.000000e+00> : vector<8xf32>
    %42 = vector.multi_reduction <add>, %41, %cst_21 [1] : vector<8x32xf32> to vector<8xf32>
    %43 = vector.shape_cast %42 : vector<8xf32> to vector<8x1xf32>
    %44 = vector.broadcast %9 : vector<1x1xf32> to vector<8x1xf32>
    %45 = arith.addf %43, %44 : vector<8x1xf32>
    %46 = arith.subf %0, %39 : vector<8x32xf32>
    %47 = arith.addf %1, %45 : vector<8x1xf32>
    %c1 = arith.constant 1 : index
    %c0_22 = arith.constant 0 : index
    %c0_23 = arith.constant 0 : index
    %48 = vector.load %arg4[%c1, %c0_22, %c0_23] : memref<6x6x32xf32, #tpu.memory_space<vmem>>, vector<1x6x32xf32>
    %49 = vector.shape_cast %48 : vector<1x6x32xf32> to vector<6x32xf32>
    %50 = vector.extract_strided_slice %49 {offsets = [0, 0], sizes = [1, 32], strides = [1, 1]} : vector<6x32xf32> to vector<1x32xf32>
    %51 = vector.extract_strided_slice %49 {offsets = [1, 0], sizes = [1, 32], strides = [1, 1]} : vector<6x32xf32> to vector<1x32xf32>
    %52 = vector.extract_strided_slice %49 {offsets = [2, 0], sizes = [1, 32], strides = [1, 1]} : vector<6x32xf32> to vector<1x32xf32>
    %53 = vector.extract_strided_slice %49 {offsets = [3, 0], sizes = [1, 32], strides = [1, 1]} : vector<6x32xf32> to vector<1x32xf32>
    %54 = vector.extract_strided_slice %49 {offsets = [4, 0], sizes = [1, 32], strides = [1, 1]} : vector<6x32xf32> to vector<1x32xf32>
    %55 = vector.extract_strided_slice %49 {offsets = [5, 0], sizes = [1, 1], strides = [1, 1]} : vector<6x32xf32> to vector<1x1xf32>
    %c1_24 = arith.constant 1 : index
    %c0_25 = arith.constant 0 : index
    %c0_26 = arith.constant 0 : index
    %56 = vector.load %arg2[%c1_24, %c0_25, %c0_26] : memref<6x96x32xbf16, #tpu.memory_space<vmem>>, vector<1x32x32xbf16>
    %57 = vector.shape_cast %56 : vector<1x32x32xbf16> to vector<32x32xbf16>
    %c1_27 = arith.constant 1 : index
    %c32_28 = arith.constant 32 : index
    %c0_29 = arith.constant 0 : index
    %58 = vector.load %arg2[%c1_27, %c32_28, %c0_29] : memref<6x96x32xbf16, #tpu.memory_space<vmem>>, vector<1x32x32xbf16>
    %59 = vector.shape_cast %58 : vector<1x32x32xbf16> to vector<32x32xbf16>
    %c1_30 = arith.constant 1 : index
    %c64_31 = arith.constant 64 : index
    %c0_32 = arith.constant 0 : index
    %60 = vector.load %arg2[%c1_30, %c64_31, %c0_32] : memref<6x96x32xbf16, #tpu.memory_space<vmem>>, vector<1x32x32xbf16>
    %61 = vector.shape_cast %60 : vector<1x32x32xbf16> to vector<32x32xbf16>
    %62 = arith.truncf %46 : vector<8x32xf32> to vector<8x32xbf16>
    %cst_33 = arith.constant dense<0.000000e+00> : vector<8x32xf32>
    %63 = tpu.matmul %62, %57, %cst_33 {dimension_numbers = #tpu.dot_dimension_numbers<[1], [0], [0], [1], [0, 0, 1, 1], [], []>} : vector<8x32xbf16>, vector<32x32xbf16>, vector<8x32xf32> -> vector<8x32xf32>
    %64 = vector.broadcast %50 : vector<1x32xf32> to vector<8x32xf32>
    %65 = arith.addf %63, %64 : vector<8x32xf32>
    %cst_34 = arith.constant 0.000000e+00 : f32
    %66 = vector.broadcast %cst_34 : f32 to vector<8x32xf32>
    %67 = arith.maximumf %65, %66 : vector<8x32xf32>
    %68 = arith.truncf %67 : vector<8x32xf32> to vector<8x32xbf16>
    %cst_35 = arith.constant dense<0.000000e+00> : vector<8x32xf32>
    %69 = tpu.matmul %68, %59, %cst_35 {dimension_numbers = #tpu.dot_dimension_numbers<[1], [0], [0], [1], [0, 0, 1, 1], [], []>} : vector<8x32xbf16>, vector<32x32xbf16>, vector<8x32xf32> -> vector<8x32xf32>
    %70 = vector.broadcast %51 : vector<1x32xf32> to vector<8x32xf32>
    %71 = arith.addf %69, %70 : vector<8x32xf32>
    %cst_36 = arith.constant 0.000000e+00 : f32
    %72 = vector.broadcast %cst_36 : f32 to vector<8x32xf32>
    %73 = arith.maximumf %71, %72 : vector<8x32xf32>
    %74 = arith.truncf %73 : vector<8x32xf32> to vector<8x32xbf16>
    %cst_37 = arith.constant dense<0.000000e+00> : vector<8x32xf32>
    %75 = tpu.matmul %74, %61, %cst_37 {dimension_numbers = #tpu.dot_dimension_numbers<[1], [0], [0], [1], [0, 0, 1, 1], [], []>} : vector<8x32xbf16>, vector<32x32xbf16>, vector<8x32xf32> -> vector<8x32xf32>
    %76 = vector.broadcast %52 : vector<1x32xf32> to vector<8x32xf32>
    %77 = arith.addf %75, %76 : vector<8x32xf32>
    %cst_38 = arith.constant 0.000000e+00 : f32
    %78 = vector.broadcast %cst_38 : f32 to vector<8x32xf32>
    %79 = arith.maximumf %77, %78 : vector<8x32xf32>
    %80 = arith.truncf %79 : vector<8x32xf32> to vector<8x32xbf16>
    %c1_39 = arith.constant 1 : index
    %c0_40 = arith.constant 0 : index
    %c0_41 = arith.constant 0 : index
    %81 = vector.load %arg3[%c1_39, %c0_40, %c0_41] : memref<6x32x32xbf16, #tpu.memory_space<vmem>>, vector<1x32x32xbf16>
    %82 = vector.shape_cast %81 : vector<1x32x32xbf16> to vector<32x32xbf16>
    %cst_42 = arith.constant dense<0.000000e+00> : vector<8x32xf32>
    %83 = tpu.matmul %80, %82, %cst_42 {dimension_numbers = #tpu.dot_dimension_numbers<[1], [0], [0], [1], [0, 0, 1, 1], [], []>} : vector<8x32xbf16>, vector<32x32xbf16>, vector<8x32xf32> -> vector<8x32xf32>
    %84 = vector.broadcast %53 : vector<1x32xf32> to vector<8x32xf32>
    %85 = arith.addf %83, %84 : vector<8x32xf32>
    %86 = vector.broadcast %54 : vector<1x32xf32> to vector<8x32xf32>
    %87 = arith.mulf %79, %86 : vector<8x32xf32>
    %cst_43 = arith.constant dense<0.000000e+00> : vector<8xf32>
    %88 = vector.multi_reduction <add>, %87, %cst_43 [1] : vector<8x32xf32> to vector<8xf32>
    %89 = vector.shape_cast %88 : vector<8xf32> to vector<8x1xf32>
    %90 = vector.broadcast %55 : vector<1x1xf32> to vector<8x1xf32>
    %91 = arith.addf %89, %90 : vector<8x1xf32>
    %92 = arith.subf %46, %85 : vector<8x32xf32>
    %93 = arith.addf %47, %91 : vector<8x1xf32>
    %c2 = arith.constant 2 : index
    %c0_44 = arith.constant 0 : index
    %c0_45 = arith.constant 0 : index
    %94 = vector.load %arg4[%c2, %c0_44, %c0_45] : memref<6x6x32xf32, #tpu.memory_space<vmem>>, vector<1x6x32xf32>
    %95 = vector.shape_cast %94 : vector<1x6x32xf32> to vector<6x32xf32>
    %96 = vector.extract_strided_slice %95 {offsets = [0, 0], sizes = [1, 32], strides = [1, 1]} : vector<6x32xf32> to vector<1x32xf32>
    %97 = vector.extract_strided_slice %95 {offsets = [1, 0], sizes = [1, 32], strides = [1, 1]} : vector<6x32xf32> to vector<1x32xf32>
    %98 = vector.extract_strided_slice %95 {offsets = [2, 0], sizes = [1, 32], strides = [1, 1]} : vector<6x32xf32> to vector<1x32xf32>
    %99 = vector.extract_strided_slice %95 {offsets = [3, 0], sizes = [1, 32], strides = [1, 1]} : vector<6x32xf32> to vector<1x32xf32>
    %100 = vector.extract_strided_slice %95 {offsets = [4, 0], sizes = [1, 32], strides = [1, 1]} : vector<6x32xf32> to vector<1x32xf32>
    %101 = vector.extract_strided_slice %95 {offsets = [5, 0], sizes = [1, 1], strides = [1, 1]} : vector<6x32xf32> to vector<1x1xf32>
    %c2_46 = arith.constant 2 : index
    %c0_47 = arith.constant 0 : index
    %c0_48 = arith.constant 0 : index
    %102 = vector.load %arg2[%c2_46, %c0_47, %c0_48] : memref<6x96x32xbf16, #tpu.memory_space<vmem>>, vector<1x32x32xbf16>
    %103 = vector.shape_cast %102 : vector<1x32x32xbf16> to vector<32x32xbf16>
    %c2_49 = arith.constant 2 : index
    %c32_50 = arith.constant 32 : index
    %c0_51 = arith.constant 0 : index
    %104 = vector.load %arg2[%c2_49, %c32_50, %c0_51] : memref<6x96x32xbf16, #tpu.memory_space<vmem>>, vector<1x32x32xbf16>
    %105 = vector.shape_cast %104 : vector<1x32x32xbf16> to vector<32x32xbf16>
    %c2_52 = arith.constant 2 : index
    %c64_53 = arith.constant 64 : index
    %c0_54 = arith.constant 0 : index
    %106 = vector.load %arg2[%c2_52, %c64_53, %c0_54] : memref<6x96x32xbf16, #tpu.memory_space<vmem>>, vector<1x32x32xbf16>
    %107 = vector.shape_cast %106 : vector<1x32x32xbf16> to vector<32x32xbf16>
    %108 = arith.truncf %92 : vector<8x32xf32> to vector<8x32xbf16>
    %cst_55 = arith.constant dense<0.000000e+00> : vector<8x32xf32>
    %109 = tpu.matmul %108, %103, %cst_55 {dimension_numbers = #tpu.dot_dimension_numbers<[1], [0], [0], [1], [0, 0, 1, 1], [], []>} : vector<8x32xbf16>, vector<32x32xbf16>, vector<8x32xf32> -> vector<8x32xf32>
    %110 = vector.broadcast %96 : vector<1x32xf32> to vector<8x32xf32>
    %111 = arith.addf %109, %110 : vector<8x32xf32>
    %cst_56 = arith.constant 0.000000e+00 : f32
    %112 = vector.broadcast %cst_56 : f32 to vector<8x32xf32>
    %113 = arith.maximumf %111, %112 : vector<8x32xf32>
    %114 = arith.truncf %113 : vector<8x32xf32> to vector<8x32xbf16>
    %cst_57 = arith.constant dense<0.000000e+00> : vector<8x32xf32>
    %115 = tpu.matmul %114, %105, %cst_57 {dimension_numbers = #tpu.dot_dimension_numbers<[1], [0], [0], [1], [0, 0, 1, 1], [], []>} : vector<8x32xbf16>, vector<32x32xbf16>, vector<8x32xf32> -> vector<8x32xf32>
    %116 = vector.broadcast %97 : vector<1x32xf32> to vector<8x32xf32>
    %117 = arith.addf %115, %116 : vector<8x32xf32>
    %cst_58 = arith.constant 0.000000e+00 : f32
    %118 = vector.broadcast %cst_58 : f32 to vector<8x32xf32>
    %119 = arith.maximumf %117, %118 : vector<8x32xf32>
    %120 = arith.truncf %119 : vector<8x32xf32> to vector<8x32xbf16>
    %cst_59 = arith.constant dense<0.000000e+00> : vector<8x32xf32>
    %121 = tpu.matmul %120, %107, %cst_59 {dimension_numbers = #tpu.dot_dimension_numbers<[1], [0], [0], [1], [0, 0, 1, 1], [], []>} : vector<8x32xbf16>, vector<32x32xbf16>, vector<8x32xf32> -> vector<8x32xf32>
    %122 = vector.broadcast %98 : vector<1x32xf32> to vector<8x32xf32>
    %123 = arith.addf %121, %122 : vector<8x32xf32>
    %cst_60 = arith.constant 0.000000e+00 : f32
    %124 = vector.broadcast %cst_60 : f32 to vector<8x32xf32>
    %125 = arith.maximumf %123, %124 : vector<8x32xf32>
    %126 = arith.truncf %125 : vector<8x32xf32> to vector<8x32xbf16>
    %c2_61 = arith.constant 2 : index
    %c0_62 = arith.constant 0 : index
    %c0_63 = arith.constant 0 : index
    %127 = vector.load %arg3[%c2_61, %c0_62, %c0_63] : memref<6x32x32xbf16, #tpu.memory_space<vmem>>, vector<1x32x32xbf16>
    %128 = vector.shape_cast %127 : vector<1x32x32xbf16> to vector<32x32xbf16>
    %cst_64 = arith.constant dense<0.000000e+00> : vector<8x32xf32>
    %129 = tpu.matmul %126, %128, %cst_64 {dimension_numbers = #tpu.dot_dimension_numbers<[1], [0], [0], [1], [0, 0, 1, 1], [], []>} : vector<8x32xbf16>, vector<32x32xbf16>, vector<8x32xf32> -> vector<8x32xf32>
    %130 = vector.broadcast %99 : vector<1x32xf32> to vector<8x32xf32>
    %131 = arith.addf %129, %130 : vector<8x32xf32>
    %132 = vector.broadcast %100 : vector<1x32xf32> to vector<8x32xf32>
    %133 = arith.mulf %125, %132 : vector<8x32xf32>
    %cst_65 = arith.constant dense<0.000000e+00> : vector<8xf32>
    %134 = vector.multi_reduction <add>, %133, %cst_65 [1] : vector<8x32xf32> to vector<8xf32>
    %135 = vector.shape_cast %134 : vector<8xf32> to vector<8x1xf32>
    %136 = vector.broadcast %101 : vector<1x1xf32> to vector<8x1xf32>
    %137 = arith.addf %135, %136 : vector<8x1xf32>
    %138 = arith.subf %92, %131 : vector<8x32xf32>
    %139 = arith.addf %93, %137 : vector<8x1xf32>
    %c3 = arith.constant 3 : index
    %c0_66 = arith.constant 0 : index
    %c0_67 = arith.constant 0 : index
    %140 = vector.load %arg4[%c3, %c0_66, %c0_67] : memref<6x6x32xf32, #tpu.memory_space<vmem>>, vector<1x6x32xf32>
    %141 = vector.shape_cast %140 : vector<1x6x32xf32> to vector<6x32xf32>
    %142 = vector.extract_strided_slice %141 {offsets = [0, 0], sizes = [1, 32], strides = [1, 1]} : vector<6x32xf32> to vector<1x32xf32>
    %143 = vector.extract_strided_slice %141 {offsets = [1, 0], sizes = [1, 32], strides = [1, 1]} : vector<6x32xf32> to vector<1x32xf32>
    %144 = vector.extract_strided_slice %141 {offsets = [2, 0], sizes = [1, 32], strides = [1, 1]} : vector<6x32xf32> to vector<1x32xf32>
    %145 = vector.extract_strided_slice %141 {offsets = [3, 0], sizes = [1, 32], strides = [1, 1]} : vector<6x32xf32> to vector<1x32xf32>
    %146 = vector.extract_strided_slice %141 {offsets = [4, 0], sizes = [1, 32], strides = [1, 1]} : vector<6x32xf32> to vector<1x32xf32>
    %147 = vector.extract_strided_slice %141 {offsets = [5, 0], sizes = [1, 1], strides = [1, 1]} : vector<6x32xf32> to vector<1x1xf32>
    %c3_68 = arith.constant 3 : index
    %c0_69 = arith.constant 0 : index
    %c0_70 = arith.constant 0 : index
    %148 = vector.load %arg2[%c3_68, %c0_69, %c0_70] : memref<6x96x32xbf16, #tpu.memory_space<vmem>>, vector<1x32x32xbf16>
    %149 = vector.shape_cast %148 : vector<1x32x32xbf16> to vector<32x32xbf16>
    %c3_71 = arith.constant 3 : index
    %c32_72 = arith.constant 32 : index
    %c0_73 = arith.constant 0 : index
    %150 = vector.load %arg2[%c3_71, %c32_72, %c0_73] : memref<6x96x32xbf16, #tpu.memory_space<vmem>>, vector<1x32x32xbf16>
    %151 = vector.shape_cast %150 : vector<1x32x32xbf16> to vector<32x32xbf16>
    %c3_74 = arith.constant 3 : index
    %c64_75 = arith.constant 64 : index
    %c0_76 = arith.constant 0 : index
    %152 = vector.load %arg2[%c3_74, %c64_75, %c0_76] : memref<6x96x32xbf16, #tpu.memory_space<vmem>>, vector<1x32x32xbf16>
    %153 = vector.shape_cast %152 : vector<1x32x32xbf16> to vector<32x32xbf16>
    %154 = arith.truncf %138 : vector<8x32xf32> to vector<8x32xbf16>
    %cst_77 = arith.constant dense<0.000000e+00> : vector<8x32xf32>
    %155 = tpu.matmul %154, %149, %cst_77 {dimension_numbers = #tpu.dot_dimension_numbers<[1], [0], [0], [1], [0, 0, 1, 1], [], []>} : vector<8x32xbf16>, vector<32x32xbf16>, vector<8x32xf32> -> vector<8x32xf32>
    %156 = vector.broadcast %142 : vector<1x32xf32> to vector<8x32xf32>
    %157 = arith.addf %155, %156 : vector<8x32xf32>
    %cst_78 = arith.constant 0.000000e+00 : f32
    %158 = vector.broadcast %cst_78 : f32 to vector<8x32xf32>
    %159 = arith.maximumf %157, %158 : vector<8x32xf32>
    %160 = arith.truncf %159 : vector<8x32xf32> to vector<8x32xbf16>
    %cst_79 = arith.constant dense<0.000000e+00> : vector<8x32xf32>
    %161 = tpu.matmul %160, %151, %cst_79 {dimension_numbers = #tpu.dot_dimension_numbers<[1], [0], [0], [1], [0, 0, 1, 1], [], []>} : vector<8x32xbf16>, vector<32x32xbf16>, vector<8x32xf32> -> vector<8x32xf32>
    %162 = vector.broadcast %143 : vector<1x32xf32> to vector<8x32xf32>
    %163 = arith.addf %161, %162 : vector<8x32xf32>
    %cst_80 = arith.constant 0.000000e+00 : f32
    %164 = vector.broadcast %cst_80 : f32 to vector<8x32xf32>
    %165 = arith.maximumf %163, %164 : vector<8x32xf32>
    %166 = arith.truncf %165 : vector<8x32xf32> to vector<8x32xbf16>
    %cst_81 = arith.constant dense<0.000000e+00> : vector<8x32xf32>
    %167 = tpu.matmul %166, %153, %cst_81 {dimension_numbers = #tpu.dot_dimension_numbers<[1], [0], [0], [1], [0, 0, 1, 1], [], []>} : vector<8x32xbf16>, vector<32x32xbf16>, vector<8x32xf32> -> vector<8x32xf32>
    %168 = vector.broadcast %144 : vector<1x32xf32> to vector<8x32xf32>
    %169 = arith.addf %167, %168 : vector<8x32xf32>
    %cst_82 = arith.constant 0.000000e+00 : f32
    %170 = vector.broadcast %cst_82 : f32 to vector<8x32xf32>
    %171 = arith.maximumf %169, %170 : vector<8x32xf32>
    %172 = arith.truncf %171 : vector<8x32xf32> to vector<8x32xbf16>
    %c3_83 = arith.constant 3 : index
    %c0_84 = arith.constant 0 : index
    %c0_85 = arith.constant 0 : index
    %173 = vector.load %arg3[%c3_83, %c0_84, %c0_85] : memref<6x32x32xbf16, #tpu.memory_space<vmem>>, vector<1x32x32xbf16>
    %174 = vector.shape_cast %173 : vector<1x32x32xbf16> to vector<32x32xbf16>
    %cst_86 = arith.constant dense<0.000000e+00> : vector<8x32xf32>
    %175 = tpu.matmul %172, %174, %cst_86 {dimension_numbers = #tpu.dot_dimension_numbers<[1], [0], [0], [1], [0, 0, 1, 1], [], []>} : vector<8x32xbf16>, vector<32x32xbf16>, vector<8x32xf32> -> vector<8x32xf32>
    %176 = vector.broadcast %145 : vector<1x32xf32> to vector<8x32xf32>
    %177 = arith.addf %175, %176 : vector<8x32xf32>
    %178 = vector.broadcast %146 : vector<1x32xf32> to vector<8x32xf32>
    %179 = arith.mulf %171, %178 : vector<8x32xf32>
    %cst_87 = arith.constant dense<0.000000e+00> : vector<8xf32>
    %180 = vector.multi_reduction <add>, %179, %cst_87 [1] : vector<8x32xf32> to vector<8xf32>
    %181 = vector.shape_cast %180 : vector<8xf32> to vector<8x1xf32>
    %182 = vector.broadcast %147 : vector<1x1xf32> to vector<8x1xf32>
    %183 = arith.addf %181, %182 : vector<8x1xf32>
    %184 = arith.subf %138, %177 : vector<8x32xf32>
    %185 = arith.addf %139, %183 : vector<8x1xf32>
    %c4 = arith.constant 4 : index
    %c0_88 = arith.constant 0 : index
    %c0_89 = arith.constant 0 : index
    %186 = vector.load %arg4[%c4, %c0_88, %c0_89] : memref<6x6x32xf32, #tpu.memory_space<vmem>>, vector<1x6x32xf32>
    %187 = vector.shape_cast %186 : vector<1x6x32xf32> to vector<6x32xf32>
    %188 = vector.extract_strided_slice %187 {offsets = [0, 0], sizes = [1, 32], strides = [1, 1]} : vector<6x32xf32> to vector<1x32xf32>
    %189 = vector.extract_strided_slice %187 {offsets = [1, 0], sizes = [1, 32], strides = [1, 1]} : vector<6x32xf32> to vector<1x32xf32>
    %190 = vector.extract_strided_slice %187 {offsets = [2, 0], sizes = [1, 32], strides = [1, 1]} : vector<6x32xf32> to vector<1x32xf32>
    %191 = vector.extract_strided_slice %187 {offsets = [3, 0], sizes = [1, 32], strides = [1, 1]} : vector<6x32xf32> to vector<1x32xf32>
    %192 = vector.extract_strided_slice %187 {offsets = [4, 0], sizes = [1, 32], strides = [1, 1]} : vector<6x32xf32> to vector<1x32xf32>
    %193 = vector.extract_strided_slice %187 {offsets = [5, 0], sizes = [1, 1], strides = [1, 1]} : vector<6x32xf32> to vector<1x1xf32>
    %c4_90 = arith.constant 4 : index
    %c0_91 = arith.constant 0 : index
    %c0_92 = arith.constant 0 : index
    %194 = vector.load %arg2[%c4_90, %c0_91, %c0_92] : memref<6x96x32xbf16, #tpu.memory_space<vmem>>, vector<1x32x32xbf16>
    %195 = vector.shape_cast %194 : vector<1x32x32xbf16> to vector<32x32xbf16>
    %c4_93 = arith.constant 4 : index
    %c32_94 = arith.constant 32 : index
    %c0_95 = arith.constant 0 : index
    %196 = vector.load %arg2[%c4_93, %c32_94, %c0_95] : memref<6x96x32xbf16, #tpu.memory_space<vmem>>, vector<1x32x32xbf16>
    %197 = vector.shape_cast %196 : vector<1x32x32xbf16> to vector<32x32xbf16>
    %c4_96 = arith.constant 4 : index
    %c64_97 = arith.constant 64 : index
    %c0_98 = arith.constant 0 : index
    %198 = vector.load %arg2[%c4_96, %c64_97, %c0_98] : memref<6x96x32xbf16, #tpu.memory_space<vmem>>, vector<1x32x32xbf16>
    %199 = vector.shape_cast %198 : vector<1x32x32xbf16> to vector<32x32xbf16>
    %200 = arith.truncf %184 : vector<8x32xf32> to vector<8x32xbf16>
    %cst_99 = arith.constant dense<0.000000e+00> : vector<8x32xf32>
    %201 = tpu.matmul %200, %195, %cst_99 {dimension_numbers = #tpu.dot_dimension_numbers<[1], [0], [0], [1], [0, 0, 1, 1], [], []>} : vector<8x32xbf16>, vector<32x32xbf16>, vector<8x32xf32> -> vector<8x32xf32>
    %202 = vector.broadcast %188 : vector<1x32xf32> to vector<8x32xf32>
    %203 = arith.addf %201, %202 : vector<8x32xf32>
    %cst_100 = arith.constant 0.000000e+00 : f32
    %204 = vector.broadcast %cst_100 : f32 to vector<8x32xf32>
    %205 = arith.maximumf %203, %204 : vector<8x32xf32>
    %206 = arith.truncf %205 : vector<8x32xf32> to vector<8x32xbf16>
    %cst_101 = arith.constant dense<0.000000e+00> : vector<8x32xf32>
    %207 = tpu.matmul %206, %197, %cst_101 {dimension_numbers = #tpu.dot_dimension_numbers<[1], [0], [0], [1], [0, 0, 1, 1], [], []>} : vector<8x32xbf16>, vector<32x32xbf16>, vector<8x32xf32> -> vector<8x32xf32>
    %208 = vector.broadcast %189 : vector<1x32xf32> to vector<8x32xf32>
    %209 = arith.addf %207, %208 : vector<8x32xf32>
    %cst_102 = arith.constant 0.000000e+00 : f32
    %210 = vector.broadcast %cst_102 : f32 to vector<8x32xf32>
    %211 = arith.maximumf %209, %210 : vector<8x32xf32>
    %212 = arith.truncf %211 : vector<8x32xf32> to vector<8x32xbf16>
    %cst_103 = arith.constant dense<0.000000e+00> : vector<8x32xf32>
    %213 = tpu.matmul %212, %199, %cst_103 {dimension_numbers = #tpu.dot_dimension_numbers<[1], [0], [0], [1], [0, 0, 1, 1], [], []>} : vector<8x32xbf16>, vector<32x32xbf16>, vector<8x32xf32> -> vector<8x32xf32>
    %214 = vector.broadcast %190 : vector<1x32xf32> to vector<8x32xf32>
    %215 = arith.addf %213, %214 : vector<8x32xf32>
    %cst_104 = arith.constant 0.000000e+00 : f32
    %216 = vector.broadcast %cst_104 : f32 to vector<8x32xf32>
    %217 = arith.maximumf %215, %216 : vector<8x32xf32>
    %218 = arith.truncf %217 : vector<8x32xf32> to vector<8x32xbf16>
    %c4_105 = arith.constant 4 : index
    %c0_106 = arith.constant 0 : index
    %c0_107 = arith.constant 0 : index
    %219 = vector.load %arg3[%c4_105, %c0_106, %c0_107] : memref<6x32x32xbf16, #tpu.memory_space<vmem>>, vector<1x32x32xbf16>
    %220 = vector.shape_cast %219 : vector<1x32x32xbf16> to vector<32x32xbf16>
    %cst_108 = arith.constant dense<0.000000e+00> : vector<8x32xf32>
    %221 = tpu.matmul %218, %220, %cst_108 {dimension_numbers = #tpu.dot_dimension_numbers<[1], [0], [0], [1], [0, 0, 1, 1], [], []>} : vector<8x32xbf16>, vector<32x32xbf16>, vector<8x32xf32> -> vector<8x32xf32>
    %222 = vector.broadcast %191 : vector<1x32xf32> to vector<8x32xf32>
    %223 = arith.addf %221, %222 : vector<8x32xf32>
    %224 = vector.broadcast %192 : vector<1x32xf32> to vector<8x32xf32>
    %225 = arith.mulf %217, %224 : vector<8x32xf32>
    %cst_109 = arith.constant dense<0.000000e+00> : vector<8xf32>
    %226 = vector.multi_reduction <add>, %225, %cst_109 [1] : vector<8x32xf32> to vector<8xf32>
    %227 = vector.shape_cast %226 : vector<8xf32> to vector<8x1xf32>
    %228 = vector.broadcast %193 : vector<1x1xf32> to vector<8x1xf32>
    %229 = arith.addf %227, %228 : vector<8x1xf32>
    %230 = arith.subf %184, %223 : vector<8x32xf32>
    %231 = arith.addf %185, %229 : vector<8x1xf32>
    %c5 = arith.constant 5 : index
    %c0_110 = arith.constant 0 : index
    %c0_111 = arith.constant 0 : index
    %232 = vector.load %arg4[%c5, %c0_110, %c0_111] : memref<6x6x32xf32, #tpu.memory_space<vmem>>, vector<1x6x32xf32>
    %233 = vector.shape_cast %232 : vector<1x6x32xf32> to vector<6x32xf32>
    %234 = vector.extract_strided_slice %233 {offsets = [0, 0], sizes = [1, 32], strides = [1, 1]} : vector<6x32xf32> to vector<1x32xf32>
    %235 = vector.extract_strided_slice %233 {offsets = [1, 0], sizes = [1, 32], strides = [1, 1]} : vector<6x32xf32> to vector<1x32xf32>
    %236 = vector.extract_strided_slice %233 {offsets = [2, 0], sizes = [1, 32], strides = [1, 1]} : vector<6x32xf32> to vector<1x32xf32>
    %237 = vector.extract_strided_slice %233 {offsets = [4, 0], sizes = [1, 32], strides = [1, 1]} : vector<6x32xf32> to vector<1x32xf32>
    %238 = vector.extract_strided_slice %233 {offsets = [5, 0], sizes = [1, 1], strides = [1, 1]} : vector<6x32xf32> to vector<1x1xf32>
    %c5_112 = arith.constant 5 : index
    %c0_113 = arith.constant 0 : index
    %c0_114 = arith.constant 0 : index
    %239 = vector.load %arg2[%c5_112, %c0_113, %c0_114] : memref<6x96x32xbf16, #tpu.memory_space<vmem>>, vector<1x32x32xbf16>
    %240 = vector.shape_cast %239 : vector<1x32x32xbf16> to vector<32x32xbf16>
    %c5_115 = arith.constant 5 : index
    %c32_116 = arith.constant 32 : index
    %c0_117 = arith.constant 0 : index
    %241 = vector.load %arg2[%c5_115, %c32_116, %c0_117] : memref<6x96x32xbf16, #tpu.memory_space<vmem>>, vector<1x32x32xbf16>
    %242 = vector.shape_cast %241 : vector<1x32x32xbf16> to vector<32x32xbf16>
    %c5_118 = arith.constant 5 : index
    %c64_119 = arith.constant 64 : index
    %c0_120 = arith.constant 0 : index
    %243 = vector.load %arg2[%c5_118, %c64_119, %c0_120] : memref<6x96x32xbf16, #tpu.memory_space<vmem>>, vector<1x32x32xbf16>
    %244 = vector.shape_cast %243 : vector<1x32x32xbf16> to vector<32x32xbf16>
    %245 = arith.truncf %230 : vector<8x32xf32> to vector<8x32xbf16>
    %cst_121 = arith.constant dense<0.000000e+00> : vector<8x32xf32>
    %246 = tpu.matmul %245, %240, %cst_121 {dimension_numbers = #tpu.dot_dimension_numbers<[1], [0], [0], [1], [0, 0, 1, 1], [], []>} : vector<8x32xbf16>, vector<32x32xbf16>, vector<8x32xf32> -> vector<8x32xf32>
    %247 = vector.broadcast %234 : vector<1x32xf32> to vector<8x32xf32>
    %248 = arith.addf %246, %247 : vector<8x32xf32>
    %cst_122 = arith.constant 0.000000e+00 : f32
    %249 = vector.broadcast %cst_122 : f32 to vector<8x32xf32>
    %250 = arith.maximumf %248, %249 : vector<8x32xf32>
    %251 = arith.truncf %250 : vector<8x32xf32> to vector<8x32xbf16>
    %cst_123 = arith.constant dense<0.000000e+00> : vector<8x32xf32>
    %252 = tpu.matmul %251, %242, %cst_123 {dimension_numbers = #tpu.dot_dimension_numbers<[1], [0], [0], [1], [0, 0, 1, 1], [], []>} : vector<8x32xbf16>, vector<32x32xbf16>, vector<8x32xf32> -> vector<8x32xf32>
    %253 = vector.broadcast %235 : vector<1x32xf32> to vector<8x32xf32>
    %254 = arith.addf %252, %253 : vector<8x32xf32>
    %cst_124 = arith.constant 0.000000e+00 : f32
    %255 = vector.broadcast %cst_124 : f32 to vector<8x32xf32>
    %256 = arith.maximumf %254, %255 : vector<8x32xf32>
    %257 = arith.truncf %256 : vector<8x32xf32> to vector<8x32xbf16>
    %cst_125 = arith.constant dense<0.000000e+00> : vector<8x32xf32>
    %258 = tpu.matmul %257, %244, %cst_125 {dimension_numbers = #tpu.dot_dimension_numbers<[1], [0], [0], [1], [0, 0, 1, 1], [], []>} : vector<8x32xbf16>, vector<32x32xbf16>, vector<8x32xf32> -> vector<8x32xf32>
    %259 = vector.broadcast %236 : vector<1x32xf32> to vector<8x32xf32>
    %260 = arith.addf %258, %259 : vector<8x32xf32>
    %cst_126 = arith.constant 0.000000e+00 : f32
    %261 = vector.broadcast %cst_126 : f32 to vector<8x32xf32>
    %262 = arith.maximumf %260, %261 : vector<8x32xf32>
    %263 = vector.broadcast %237 : vector<1x32xf32> to vector<8x32xf32>
    %264 = arith.mulf %262, %263 : vector<8x32xf32>
    %cst_127 = arith.constant dense<0.000000e+00> : vector<8xf32>
    %265 = vector.multi_reduction <add>, %264, %cst_127 [1] : vector<8x32xf32> to vector<8xf32>
    %266 = vector.shape_cast %265 : vector<8xf32> to vector<8x1xf32>
    %267 = vector.broadcast %238 : vector<1x1xf32> to vector<8x1xf32>
    %268 = arith.addf %266, %267 : vector<8x1xf32>
    %269 = arith.addf %231, %268 : vector<8x1xf32>
    %c0_128 = arith.constant 0 : index
    %c0_129 = arith.constant 0 : index
    %270 = vector.load %arg5[%c0_128, %c0_129] : memref<8x1xf32, #tpu.memory_space<vmem>>, vector<8x1xf32>
    tpu.vector_store %arg5[%c0_128, %c0_129], %269 {strides = array<i32>} : memref<8x1xf32, #tpu.memory_space<vmem>>, vector<8x1xf32>,
    return
  }
  func.func @transform_0(%arg0: i32) -> (i32, i32) {
    %c0_i32 = arith.constant 0 : i32
    %c0_i32_0 = arith.constant 0 : i32
    return %arg0, %c0_i32 : i32, i32
  }
  func.func @transform_1(%arg0: i32) -> (i32, i32, i32) {
    %c0_i32 = arith.constant 0 : i32
    %c0_i32_0 = arith.constant 0 : i32
    %c0_i32_1 = arith.constant 0 : i32
    %c0_i32_2 = arith.constant 0 : i32
    return %c0_i32, %c0_i32_0, %c0_i32_1 : i32, i32, i32
  }
  func.func @transform_2(%arg0: i32) -> (i32, i32, i32) {
    %c0_i32 = arith.constant 0 : i32
    %c0_i32_0 = arith.constant 0 : i32
    %c0_i32_1 = arith.constant 0 : i32
    %c0_i32_2 = arith.constant 0 : i32
    return %c0_i32, %c0_i32_0, %c0_i32_1 : i32, i32, i32
  }
  func.func @transform_3(%arg0: i32) -> (i32, i32, i32) {
    %c0_i32 = arith.constant 0 : i32
    %c0_i32_0 = arith.constant 0 : i32
    %c0_i32_1 = arith.constant 0 : i32
    %c0_i32_2 = arith.constant 0 : i32
    return %c0_i32, %c0_i32_0, %c0_i32_1 : i32, i32, i32
  }
  func.func @transform_4(%arg0: i32) -> (i32, i32) {
    %c0_i32 = arith.constant 0 : i32
    %c0_i32_0 = arith.constant 0 : i32
    return %arg0, %c0_i32 : i32, i32
  }
}

</mosaic_0001>

<llo_original>
// kernel: tpu_custom_call.1
$region0: #{tpu_custom_call.1}
  #allocation0 [shape = 'u32[]', space=smem, size = 0x4, offset = 0x4, fixed_abs, tag = 'smem constant byte address 0x4 - core index']
  #allocation1 [shape = 'u32[144,128]{1,0:T(1,128)}', space=vmem, size = 0x12000, scoped, tag = 'internal scratch']
  %s0 = inlined_call_operand.vmem [shape: f32[8,32], index: 0, kind: input, shape index: {}]
  %s1 = inlined_call_operand.vmem [shape: bf16[6,96,32], index: 1, kind: input, shape index: {}]
  %s2 = inlined_call_operand.vmem [shape: bf16[6,32,32], index: 2, kind: input, shape index: {}]
  %s3 = inlined_call_operand.vmem [shape: f32[6,6,32], index: 3, kind: input, shape index: {}]
  %s4 = inlined_call_operand.vmem [shape: f32[8,1], index: 4, kind: output, shape index: {}]
  %s5 = sld [smem:[#allocation0]]
  $region26: #{tpu_custom_call.1} parent=0
    _
  %s7 = ssub.s32 1, %s5
  %s8 = scalar_select 0, %s7, %s5
  // Predicated region
  $region2: #{tpu_custom_call.1} parent=0 // pred_check
    _
  $region3: #{tpu_custom_call.1} parent=0 // pred_check_branch
    %10 = sbr.rel (0) target = $region5
  $region4: #{tpu_custom_call.1} parent=0 // pred_region
    _
  $region5: #{tpu_custom_call.1} parent=0 // pred_fallthru
    _
  // Predicated region
  $region6: #{tpu_custom_call.1} parent=0 // pred_check
    _
  $region7: #{tpu_custom_call.1} parent=0 // pred_check_branch
    %12 = sbr.rel (0) target = $region9
  $region8: #{tpu_custom_call.1} parent=0 // pred_region
    _
  $region9: #{tpu_custom_call.1} parent=0 // pred_fallthru
    _
  // Predicated region
  $region10: #{tpu_custom_call.1} parent=0 // pred_check
    _
  $region11: #{tpu_custom_call.1} parent=0 // pred_check_branch
    %14 = sbr.rel (0) target = $region13
  $region12: #{tpu_custom_call.1} parent=0 // pred_region
    _
  $region13: #{tpu_custom_call.1} parent=0 // pred_fallthru
    _
  // Predicated region
  $region14: #{tpu_custom_call.1} parent=0 // pred_check
    _
  $region15: #{tpu_custom_call.1} parent=0 // pred_check_branch
    %16 = sbr.rel (0) target = $region17
  $region16: #{tpu_custom_call.1} parent=0 // pred_region
    _
  $region17: #{tpu_custom_call.1} parent=0 // pred_fallthru
    _
  %v18 = vld [vmem:[%s0] sm:$0xff]
  %v19 = vld [vmem:[%s3] sm:$0x3f]
  %v20 = vld [vmem:[%s1] sm:$0xf]
  %v21 = vld [vmem:[%s1 + $0x4] sm:$0xf]
  %v22 = vld [vmem:[%s1 + $0x8] sm:$0xf]
  %v23 = vld [vmem:[%s1 + $0xc] sm:$0xf]
  %v24 = vld [vmem:[%s1 + $0x10] sm:$0xf]
  %v25 = vld [vmem:[%s1 + $0x14] sm:$0xf]
  %v26 = vld [vmem:[%s1 + $0x18] sm:$0xf]
  %v27 = vld [vmem:[%s1 + $0x1c] sm:$0xf]
  %v28 = vld [vmem:[%s1 + $0x20] sm:$0xf]
  %v29 = vld [vmem:[%s1 + $0x24] sm:$0xf]
  %v30 = vld [vmem:[%s1 + $0x28] sm:$0xf]
  %v31 = vld [vmem:[%s1 + $0x2c] sm:$0xf]
  %v32 = vpack.c.bf16 %v18, %v18
  %v33 = vlaneseq
  %v34 = vshrl.u32 %v33, 7
  %v35 = vsub.s32 0, %v34
  %v36 = vrot.slane %v19, %v35
  %v41 = vunpack.c.l.b16 %v20
  %v42 = vunpack.c.l.b16 %v21
  %v43 = vunpack.c.l.b16 %v22
  %v44 = vunpack.c.l.b16 %v23
  %v45 = vpack.c.b16 %v42, %v41
  %v46 = vpack.c.b16 %v44, %v43
  %vm49 = vcmask 261120
  %v51 = vsel %vm49, %v32, 0
  %53 = vmatprep.subr.bf16.mxu0 0
  %54 = vmatpush1.bf16.msra.mxu0 0
  %55 = vmatprep.subr.bf16.mxu0 0
  %56 = vmatpush1.bf16.msra.mxu0 0
  %57 = vmatprep.subr.bf16.mxu0 0
  %58 = vmatpush1.bf16.msra.mxu0 0
  %59 = vmatprep.subr.bf16.mxu0 0
  %60 = vmatpush1.bf16.msra.mxu0 0
  %61 = vmatprep.subr.bf16.mxu0 0
  %62 = vmatpush1.bf16.msra.mxu0 0
  %63 = vmatprep.subr.bf16.mxu0 0
  %64 = vmatpush1.bf16.msra.mxu0 0
  %65 = vmatprep.subr.bf16.mxu0 0
  %66 = vmatpush1.bf16.msra.mxu0 %v46
  %67 = vmatprep.subr.bf16.mxu0 0
  %68 = vmatpush1.bf16.msra.mxu0 %v45
  %69 = vmatprep.subr.bf16.mxu0 0
  %70 = vmatpush2.bf16.msra.mxu0 0
  %71 = vmatprep.subr.bf16.mxu0 0
  %72 = vmatpush2.bf16.msra.mxu0 0
  %73 = vmatprep.subr.bf16.mxu0 0
  %74 = vmatpush2.bf16.msra.mxu0 0
  %75 = vmatprep.subr.bf16.mxu0 0
  %76 = vmatpush2.bf16.msra.mxu0 0
  %77 = vmatprep.subr.bf16.mxu0 0
  %78 = vmatpush2.bf16.msra.mxu0 0
  %79 = vmatprep.subr.bf16.mxu0 0
  %80 = vmatpush2.bf16.msra.mxu0 0
  %81 = vmatprep.subr.bf16.mxu0 0
  %82 = vmatpush2.bf16.msra.mxu0 0
  %83 = vmatprep.subr.bf16.mxu0 0
  %84 = vmatpush2.bf16.msra.mxu0 0
  %85 = vmatprep.mubr.bf16.mxu0 0
  %86 = vmatmul.mubr.bf16.gmra.mxu0 %v51
  %v87 = vpop.f32.mrf.mxu0
  %v88 = vadd.f32 %v36, %v87
  %v89 = vpop.f32.mrf.mxu0
  %v90 = vpop.f32.mrf.mxu0
  %v91 = vpop.f32.mrf.mxu0
  %92 = vdwg.mxu0
  %v93 = vmax.f32 %v88, 0.0
  %v94 = vpack.c.bf16 %v93, %v93
  %v95 = vlaneseq
  %v96 = vshrl.u32 %v95, 7
  %v97 = vsub.s32 1, %v96
  %v98 = vrot.slane %v19, %v97
  %v103 = vunpack.c.l.b16 %v24
  %v104 = vunpack.c.l.b16 %v25
  %v105 = vunpack.c.l.b16 %v26
  %v106 = vunpack.c.l.b16 %v27
  %v107 = vpack.c.b16 %v104, %v103
  %v108 = vpack.c.b16 %v106, %v105
  %v112 = vsel %vm49, %v94, 0
  %114 = vmatprep.subr.bf16.mxu0 0
  %115 = vmatpush1.bf16.msra.mxu0 0
  %116 = vmatprep.subr.bf16.mxu0 0
  %117 = vmatpush1.bf16.msra.mxu0 0
  %118 = vmatprep.subr.bf16.mxu0 0
  %119 = vmatpush1.bf16.msra.mxu0 0
  %120 = vmatprep.subr.bf16.mxu0 0
  %121 = vmatpush1.bf16.msra.mxu0 0
  %122 = vmatprep.subr.bf16.mxu0 0
  %123 = vmatpush1.bf16.msra.mxu0 0
  %124 = vmatprep.subr.bf16.mxu0 0
  %125 = vmatpush1.bf16.msra.mxu0 0
  %126 = vmatprep.subr.bf16.mxu0 0
  %127 = vmatpush1.bf16.msra.mxu0 %v108
  %128 = vmatprep.subr.bf16.mxu0 0
  %129 = vmatpush1.bf16.msra.mxu0 %v107
  %130 = vmatprep.subr.bf16.mxu0 0
  %131 = vmatpush2.bf16.msra.mxu0 0
  %132 = vmatprep.subr.bf16.mxu0 0
  %133 = vmatpush2.bf16.msra.mxu0 0
  %134 = vmatprep.subr.bf16.mxu0 0
  %135 = vmatpush2.bf16.msra.mxu0 0
  %136 = vmatprep.subr.bf16.mxu0 0
  %137 = vmatpush2.bf16.msra.mxu0 0
  %138 = vmatprep.subr.bf16.mxu0 0
  %139 = vmatpush2.bf16.msra.mxu0 0
  %140 = vmatprep.subr.bf16.mxu0 0
  %141 = vmatpush2.bf16.msra.mxu0 0
  %142 = vmatprep.subr.bf16.mxu0 0
  %143 = vmatpush2.bf16.msra.mxu0 0
  %144 = vmatprep.subr.bf16.mxu0 0
  %145 = vmatpush2.bf16.msra.mxu0 0
  %146 = vmatprep.mubr.bf16.mxu0 0
  %147 = vmatmul.mubr.bf16.gmra.mxu0 %v112
  %v148 = vpop.f32.mrf.mxu0
  %v149 = vadd.f32 %v98, %v148
  %v150 = vpop.f32.mrf.mxu0
  %v151 = vpop.f32.mrf.mxu0
  %v152 = vpop.f32.mrf.mxu0
  %153 = vdwg.mxu0
  %v154 = vmax.f32 %v149, 0.0
  %v155 = vpack.c.bf16 %v154, %v154
  %v156 = vlaneseq
  %v157 = vshrl.u32 %v156, 7
  %v158 = vsub.s32 2, %v157
  %v159 = vrot.slane %v19, %v158
  %v164 = vunpack.c.l.b16 %v28
  %v165 = vunpack.c.l.b16 %v29
  %v166 = vunpack.c.l.b16 %v30
  %v167 = vunpack.c.l.b16 %v31
  %v168 = vpack.c.b16 %v165, %v164
  %v169 = vpack.c.b16 %v167, %v166
  %v173 = vsel %vm49, %v155, 0
  %175 = vmatprep.subr.bf16.mxu0 0
  %176 = vmatpush1.bf16.msra.mxu0 0
  %177 = vmatprep.subr.bf16.mxu0 0
  %178 = vmatpush1.bf16.msra.mxu0 0
  %179 = vmatprep.subr.bf16.mxu0 0
  %180 = vmatpush1.bf16.msra.mxu0 0
  %181 = vmatprep.subr.bf16.mxu0 0
  %182 = vmatpush1.bf16.msra.mxu0 0
  %183 = vmatprep.subr.bf16.mxu0 0
  %184 = vmatpush1.bf16.msra.mxu0 0
  %185 = vmatprep.subr.bf16.mxu0 0
  %186 = vmatpush1.bf16.msra.mxu0 0
  %187 = vmatprep.subr.bf16.mxu0 0
  %188 = vmatpush1.bf16.msra.mxu0 %v169
  %189 = vmatprep.subr.bf16.mxu0 0
  %190 = vmatpush1.bf16.msra.mxu0 %v168
  %191 = vmatprep.subr.bf16.mxu0 0
  %192 = vmatpush2.bf16.msra.mxu0 0
  %193 = vmatprep.subr.bf16.mxu0 0
  %194 = vmatpush2.bf16.msra.mxu0 0
  %195 = vmatprep.subr.bf16.mxu0 0
  %196 = vmatpush2.bf16.msra.mxu0 0
  %197 = vmatprep.subr.bf16.mxu0 0
  %198 = vmatpush2.bf16.msra.mxu0 0
  %199 = vmatprep.subr.bf16.mxu0 0
  %200 = vmatpush2.bf16.msra.mxu0 0
  %201 = vmatprep.subr.bf16.mxu0 0
  %202 = vmatpush2.bf16.msra.mxu0 0
  %203 = vmatprep.subr.bf16.mxu0 0
  %204 = vmatpush2.bf16.msra.mxu0 0
  %205 = vmatprep.subr.bf16.mxu0 0
  %206 = vmatpush2.bf16.msra.mxu0 0
  %207 = vmatprep.mubr.bf16.mxu0 0
  %208 = vmatmul.mubr.bf16.gmra.mxu0 %v173
  %v209 = vpop.f32.mrf.mxu0
  %v210 = vadd.f32 %v159, %v209
  %v211 = vpop.f32.mrf.mxu0
  %v212 = vpop.f32.mrf.mxu0
  %v213 = vpop.f32.mrf.mxu0
  %214 = vdwg.mxu0
  %v215 = vmax.f32 %v210, 0.0
  %v216 = vpack.c.bf16 %v215, %v215
  %v217 = vld [vmem:[%s2] sm:$0xf]
  %v218 = vld [vmem:[%s2 + $0x4] sm:$0xf]
  %v219 = vld [vmem:[%s2 + $0x8] sm:$0xf]
  %v220 = vld [vmem:[%s2 + $0xc] sm:$0xf]
  %v221 = vlaneseq
  %v222 = vshrl.u32 %v221, 7
  %v223 = vsub.s32 3, %v222
  %v224 = vrot.slane %v19, %v223
  %v229 = vunpack.c.l.b16 %v217
  %v230 = vunpack.c.l.b16 %v218
  %v231 = vunpack.c.l.b16 %v219
  %v232 = vunpack.c.l.b16 %v220
  %v233 = vpack.c.b16 %v230, %v229
  %v234 = vpack.c.b16 %v232, %v231
  %v238 = vsel %vm49, %v216, 0
  %240 = vmatprep.subr.bf16.mxu0 0
  %241 = vmatpush1.bf16.msra.mxu0 0
  %242 = vmatprep.subr.bf16.mxu0 0
  %243 = vmatpush1.bf16.msra.mxu0 0
  %244 = vmatprep.subr.bf16.mxu0 0
  %245 = vmatpush1.bf16.msra.mxu0 0
  %246 = vmatprep.subr.bf16.mxu0 0
  %247 = vmatpush1.bf16.msra.mxu0 0
  %248 = vmatprep.subr.bf16.mxu0 0
  %249 = vmatpush1.bf16.msra.mxu0 0
  %250 = vmatprep.subr.bf16.mxu0 0
  %251 = vmatpush1.bf16.msra.mxu0 0
  %252 = vmatprep.subr.bf16.mxu0 0
  %253 = vmatpush1.bf16.msra.mxu0 %v234
  %254 = vmatprep.subr.bf16.mxu0 0
  %255 = vmatpush1.bf16.msra.mxu0 %v233
  %256 = vmatprep.subr.bf16.mxu0 0
  %257 = vmatpush2.bf16.msra.mxu0 0
  %258 = vmatprep.subr.bf16.mxu0 0
  %259 = vmatpush2.bf16.msra.mxu0 0
  %260 = vmatprep.subr.bf16.mxu0 0
  %261 = vmatpush2.bf16.msra.mxu0 0
  %262 = vmatprep.subr.bf16.mxu0 0
  %263 = vmatpush2.bf16.msra.mxu0 0
  %264 = vmatprep.subr.bf16.mxu0 0
  %265 = vmatpush2.bf16.msra.mxu0 0
  %266 = vmatprep.subr.bf16.mxu0 0
  %267 = vmatpush2.bf16.msra.mxu0 0
  %268 = vmatprep.subr.bf16.mxu0 0
  %269 = vmatpush2.bf16.msra.mxu0 0
  %270 = vmatprep.subr.bf16.mxu0 0
  %271 = vmatpush2.bf16.msra.mxu0 0
  %272 = vmatprep.mubr.bf16.mxu0 0
  %273 = vmatmul.mubr.bf16.gmra.mxu0 %v238
  %v274 = vpop.f32.mrf.mxu0
  %v275 = vadd.f32 %v224, %v274
  %v276 = vpop.f32.mrf.mxu0
  %v277 = vpop.f32.mrf.mxu0
  %v278 = vpop.f32.mrf.mxu0
  %279 = vdwg.mxu0
  %v280 = vlaneseq
  %v281 = vshrl.u32 %v280, 7
  %v282 = vsub.s32 4, %v281
  %v283 = vrot.slane %v19, %v282
  %v284 = vmul.f32 %v215, %v283
  %v285 = vsel %vm49, %v284, 0.0
  %286 = vadd.xlane.f32.xlu0 %v285
  %v287 = vpop.xlane.xlu0 %286
  %v288 = vlaneseq
  %v289 = vshrl.u32 %v288, 7
  %v290 = vsub.s32 5, %v289
  %v291 = vrot.slane %v19, %v290
  %v292 = vadd.f32 %v287, %v291
  %v293 = vsub.f32 %v18, %v275
  %v294 = vadd.f32 %v292, 0.0
  %s295 = scalar_lea.vmem %s3, 8
  %v296 = vld [vmem:[%s295] sm:$0x3f]
  %s297 = scalar_lea.vmem %s1, 48
  %v298 = vld [vmem:[%s297] sm:$0xf]
  %v299 = vld [vmem:[%s297 + $0x4] sm:$0xf]
  %v300 = vld [vmem:[%s297 + $0x8] sm:$0xf]
  %v301 = vld [vmem:[%s297 + $0xc] sm:$0xf]
  %v302 = vld [vmem:[%s297 + $0x10] sm:$0xf]
  %v303 = vld [vmem:[%s297 + $0x14] sm:$0xf]
  %v304 = vld [vmem:[%s297 + $0x18] sm:$0xf]
  %v305 = vld [vmem:[%s297 + $0x1c] sm:$0xf]
  %v306 = vld [vmem:[%s297 + $0x20] sm:$0xf]
  %v307 = vld [vmem:[%s297 + $0x24] sm:$0xf]
  %v308 = vld [vmem:[%s297 + $0x28] sm:$0xf]
  %v309 = vld [vmem:[%s297 + $0x2c] sm:$0xf]
  %v310 = vpack.c.bf16 %v293, %v293
  %v311 = vlaneseq
  %v312 = vshrl.u32 %v311, 7
  %v313 = vsub.s32 0, %v312
  %v314 = vrot.slane %v296, %v313
  %v319 = vunpack.c.l.b16 %v298
  %v320 = vunpack.c.l.b16 %v299
  %v321 = vunpack.c.l.b16 %v300
  %v322 = vunpack.c.l.b16 %v301
  %v323 = vpack.c.b16 %v320, %v319
  %v324 = vpack.c.b16 %v322, %v321
  %v328 = vsel %vm49, %v310, 0
  %330 = vmatprep.subr.bf16.mxu0 0
  %331 = vmatpush1.bf16.msra.mxu0 0
  %332 = vmatprep.subr.bf16.mxu0 0
  %333 = vmatpush1.bf16.msra.mxu0 0
  %334 = vmatprep.subr.bf16.mxu0 0
  %335 = vmatpush1.bf16.msra.mxu0 0
  %336 = vmatprep.subr.bf16.mxu0 0
  %337 = vmatpush1.bf16.msra.mxu0 0
  %338 = vmatprep.subr.bf16.mxu0 0
  %339 = vmatpush1.bf16.msra.mxu0 0
  %340 = vmatprep.subr.bf16.mxu0 0
  %341 = vmatpush1.bf16.msra.mxu0 0
  %342 = vmatprep.subr.bf16.mxu0 0
  %343 = vmatpush1.bf16.msra.mxu0 %v324
  %344 = vmatprep.subr.bf16.mxu0 0
  %345 = vmatpush1.bf16.msra.mxu0 %v323
  %346 = vmatprep.subr.bf16.mxu0 0
  %347 = vmatpush2.bf16.msra.mxu0 0
  %348 = vmatprep.subr.bf16.mxu0 0
  %349 = vmatpush2.bf16.msra.mxu0 0
  %350 = vmatprep.subr.bf16.mxu0 0
  %351 = vmatpush2.bf16.msra.mxu0 0
  %352 = vmatprep.subr.bf16.mxu0 0
  %353 = vmatpush2.bf16.msra.mxu0 0
  %354 = vmatprep.subr.bf16.mxu0 0
  %355 = vmatpush2.bf16.msra.mxu0 0
  %356 = vmatprep.subr.bf16.mxu0 0
  %357 = vmatpush2.bf16.msra.mxu0 0
  %358 = vmatprep.subr.bf16.mxu0 0
  %359 = vmatpush2.bf16.msra.mxu0 0
  %360 = vmatprep.subr.bf16.mxu0 0
  %361 = vmatpush2.bf16.msra.mxu0 0
  %362 = vmatprep.mubr.bf16.mxu0 0
  %363 = vmatmul.mubr.bf16.gmra.mxu0 %v328
  %v364 = vpop.f32.mrf.mxu0
  %v365 = vadd.f32 %v314, %v364
  %v366 = vpop.f32.mrf.mxu0
  %v367 = vpop.f32.mrf.mxu0
  %v368 = vpop.f32.mrf.mxu0
  %369 = vdwg.mxu0
  %v370 = vmax.f32 %v365, 0.0
  %v371 = vpack.c.bf16 %v370, %v370
  %v372 = vlaneseq
  %v373 = vshrl.u32 %v372, 7
  %v374 = vsub.s32 1, %v373
  %v375 = vrot.slane %v296, %v374
  %v380 = vunpack.c.l.b16 %v302
  %v381 = vunpack.c.l.b16 %v303
  %v382 = vunpack.c.l.b16 %v304
  %v383 = vunpack.c.l.b16 %v305
  %v384 = vpack.c.b16 %v381, %v380
  %v385 = vpack.c.b16 %v383, %v382
  %v389 = vsel %vm49, %v371, 0
  %391 = vmatprep.subr.bf16.mxu0 0
  %392 = vmatpush1.bf16.msra.mxu0 0
  %393 = vmatprep.subr.bf16.mxu0 0
  %394 = vmatpush1.bf16.msra.mxu0 0
  %395 = vmatprep.subr.bf16.mxu0 0
  %396 = vmatpush1.bf16.msra.mxu0 0
  %397 = vmatprep.subr.bf16.mxu0 0
  %398 = vmatpush1.bf16.msra.mxu0 0
  %399 = vmatprep.subr.bf16.mxu0 0
  %400 = vmatpush1.bf16.msra.mxu0 0
  %401 = vmatprep.subr.bf16.mxu0 0
  %402 = vmatpush1.bf16.msra.mxu0 0
  %403 = vmatprep.subr.bf16.mxu0 0
  %404 = vmatpush1.bf16.msra.mxu0 %v385
  %405 = vmatprep.subr.bf16.mxu0 0
  %406 = vmatpush1.bf16.msra.mxu0 %v384
  %407 = vmatprep.subr.bf16.mxu0 0
  %408 = vmatpush2.bf16.msra.mxu0 0
  %409 = vmatprep.subr.bf16.mxu0 0
  %410 = vmatpush2.bf16.msra.mxu0 0
  %411 = vmatprep.subr.bf16.mxu0 0
  %412 = vmatpush2.bf16.msra.mxu0 0
  %413 = vmatprep.subr.bf16.mxu0 0
  %414 = vmatpush2.bf16.msra.mxu0 0
  %415 = vmatprep.subr.bf16.mxu0 0
  %416 = vmatpush2.bf16.msra.mxu0 0
  %417 = vmatprep.subr.bf16.mxu0 0
  %418 = vmatpush2.bf16.msra.mxu0 0
  %419 = vmatprep.subr.bf16.mxu0 0
  %420 = vmatpush2.bf16.msra.mxu0 0
  %421 = vmatprep.subr.bf16.mxu0 0
  %422 = vmatpush2.bf16.msra.mxu0 0
  %423 = vmatprep.mubr.bf16.mxu0 0
  %424 = vmatmul.mubr.bf16.gmra.mxu0 %v389
  %v425 = vpop.f32.mrf.mxu0
  %v426 = vadd.f32 %v375, %v425
  %v427 = vpop.f32.mrf.mxu0
  %v428 = vpop.f32.mrf.mxu0
  %v429 = vpop.f32.mrf.mxu0
  %430 = vdwg.mxu0
  %v431 = vmax.f32 %v426, 0.0
  %v432 = vpack.c.bf16 %v431, %v431
  %v433 = vlaneseq
  %v434 = vshrl.u32 %v433, 7
  %v435 = vsub.s32 2, %v434
  %v436 = vrot.slane %v296, %v435
  %v441 = vunpack.c.l.b16 %v306
  %v442 = vunpack.c.l.b16 %v307
  %v443 = vunpack.c.l.b16 %v308
  %v444 = vunpack.c.l.b16 %v309
  %v445 = vpack.c.b16 %v442, %v441
  %v446 = vpack.c.b16 %v444, %v443
  %v450 = vsel %vm49, %v432, 0
  %452 = vmatprep.subr.bf16.mxu0 0
  %453 = vmatpush1.bf16.msra.mxu0 0
  %454 = vmatprep.subr.bf16.mxu0 0
  %455 = vmatpush1.bf16.msra.mxu0 0
  %456 = vmatprep.subr.bf16.mxu0 0
  %457 = vmatpush1.bf16.msra.mxu0 0
  %458 = vmatprep.subr.bf16.mxu0 0
  %459 = vmatpush1.bf16.msra.mxu0 0
  %460 = vmatprep.subr.bf16.mxu0 0
  %461 = vmatpush1.bf16.msra.mxu0 0
  %462 = vmatprep.subr.bf16.mxu0 0
  %463 = vmatpush1.bf16.msra.mxu0 0
  %464 = vmatprep.subr.bf16.mxu0 0
  %465 = vmatpush1.bf16.msra.mxu0 %v446
  %466 = vmatprep.subr.bf16.mxu0 0
  %467 = vmatpush1.bf16.msra.mxu0 %v445
  %468 = vmatprep.subr.bf16.mxu0 0
  %469 = vmatpush2.bf16.msra.mxu0 0
  %470 = vmatprep.subr.bf16.mxu0 0
  %471 = vmatpush2.bf16.msra.mxu0 0
  %472 = vmatprep.subr.bf16.mxu0 0
  %473 = vmatpush2.bf16.msra.mxu0 0
  %474 = vmatprep.subr.bf16.mxu0 0
  %475 = vmatpush2.bf16.msra.mxu0 0
  %476 = vmatprep.subr.bf16.mxu0 0
  %477 = vmatpush2.bf16.msra.mxu0 0
  %478 = vmatprep.subr.bf16.mxu0 0
  %479 = vmatpush2.bf16.msra.mxu0 0
  %480 = vmatprep.subr.bf16.mxu0 0
  %481 = vmatpush2.bf16.msra.mxu0 0
  %482 = vmatprep.subr.bf16.mxu0 0
  %483 = vmatpush2.bf16.msra.mxu0 0
  %484 = vmatprep.mubr.bf16.mxu0 0
  %485 = vmatmul.mubr.bf16.gmra.mxu0 %v450
  %v486 = vpop.f32.mrf.mxu0
  %v487 = vadd.f32 %v436, %v486
  %v488 = vpop.f32.mrf.mxu0
  %v489 = vpop.f32.mrf.mxu0
  %v490 = vpop.f32.mrf.mxu0
  %491 = vdwg.mxu0
  %v492 = vmax.f32 %v487, 0.0
  %v493 = vpack.c.bf16 %v492, %v492
  %s494 = scalar_lea.vmem %s2, 16
  %v495 = vld [vmem:[%s494] sm:$0xf]
  %v496 = vld [vmem:[%s494 + $0x4] sm:$0xf]
  %v497 = vld [vmem:[%s494 + $0x8] sm:$0xf]
  %v498 = vld [vmem:[%s494 + $0xc] sm:$0xf]
  %v499 = vlaneseq
  %v500 = vshrl.u32 %v499, 7
  %v501 = vsub.s32 3, %v500
  %v502 = vrot.slane %v296, %v501
  %v507 = vunpack.c.l.b16 %v495
  %v508 = vunpack.c.l.b16 %v496
  %v509 = vunpack.c.l.b16 %v497
  %v510 = vunpack.c.l.b16 %v498
  %v511 = vpack.c.b16 %v508, %v507
  %v512 = vpack.c.b16 %v510, %v509
  %v516 = vsel %vm49, %v493, 0
  %518 = vmatprep.subr.bf16.mxu0 0
  %519 = vmatpush1.bf16.msra.mxu0 0
  %520 = vmatprep.subr.bf16.mxu0 0
  %521 = vmatpush1.bf16.msra.mxu0 0
  %522 = vmatprep.subr.bf16.mxu0 0
  %523 = vmatpush1.bf16.msra.mxu0 0
  %524 = vmatprep.subr.bf16.mxu0 0
  %525 = vmatpush1.bf16.msra.mxu0 0
  %526 = vmatprep.subr.bf16.mxu0 0
  %527 = vmatpush1.bf16.msra.mxu0 0
  %528 = vmatprep.subr.bf16.mxu0 0
  %529 = vmatpush1.bf16.msra.mxu0 0
  %530 = vmatprep.subr.bf16.mxu0 0
  %531 = vmatpush1.bf16.msra.mxu0 %v512
  %532 = vmatprep.subr.bf16.mxu0 0
  %533 = vmatpush1.bf16.msra.mxu0 %v511
  %534 = vmatprep.subr.bf16.mxu0 0
  %535 = vmatpush2.bf16.msra.mxu0 0
  %536 = vmatprep.subr.bf16.mxu0 0
  %537 = vmatpush2.bf16.msra.mxu0 0
  %538 = vmatprep.subr.bf16.mxu0 0
  %539 = vmatpush2.bf16.msra.mxu0 0
  %540 = vmatprep.subr.bf16.mxu0 0
  %541 = vmatpush2.bf16.msra.mxu0 0
  %542 = vmatprep.subr.bf16.mxu0 0
  %543 = vmatpush2.bf16.msra.mxu0 0
  %544 = vmatprep.subr.bf16.mxu0 0
  %545 = vmatpush2.bf16.msra.mxu0 0
  %546 = vmatprep.subr.bf16.mxu0 0
  %547 = vmatpush2.bf16.msra.mxu0 0
  %548 = vmatprep.subr.bf16.mxu0 0
  %549 = vmatpush2.bf16.msra.mxu0 0
  %550 = vmatprep.mubr.bf16.mxu0 0
  %551 = vmatmul.mubr.bf16.gmra.mxu0 %v516
  %v552 = vpop.f32.mrf.mxu0
  %v553 = vadd.f32 %v502, %v552
  %v554 = vpop.f32.mrf.mxu0
  %v555 = vpop.f32.mrf.mxu0
  %v556 = vpop.f32.mrf.mxu0
  %557 = vdwg.mxu0
  %v558 = vlaneseq
  %v559 = vshrl.u32 %v558, 7
  %v560 = vsub.s32 4, %v559
  %v561 = vrot.slane %v296, %v560
  %v562 = vmul.f32 %v492, %v561
  %v563 = vsel %vm49, %v562, 0.0
  %564 = vadd.xlane.f32.xlu0 %v563
  %v565 = vpop.xlane.xlu0 %564
  %v566 = vlaneseq
  %v567 = vshrl.u32 %v566, 7
  %v568 = vsub.s32 5, %v567
  %v569 = vrot.slane %v296, %v568
  %v570 = vadd.f32 %v565, %v569
  %v571 = vsub.f32 %v293, %v553
  %v572 = vadd.f32 %v294, %v570
  %s573 = scalar_lea.vmem %s3, 16
  %v574 = vld [vmem:[%s573] sm:$0x3f]
  %s575 = scalar_lea.vmem %s1, 96
  %v576 = vld [vmem:[%s575] sm:$0xf]
  %v577 = vld [vmem:[%s575 + $0x4] sm:$0xf]
  %v578 = vld [vmem:[%s575 + $0x8] sm:$0xf]
  %v579 = vld [vmem:[%s575 + $0xc] sm:$0xf]
  %v580 = vld [vmem:[%s575 + $0x10] sm:$0xf]
  %v581 = vld [vmem:[%s575 + $0x14] sm:$0xf]
  %v582 = vld [vmem:[%s575 + $0x18] sm:$0xf]
  %v583 = vld [vmem:[%s575 + $0x1c] sm:$0xf]
  %v584 = vld [vmem:[%s575 + $0x20] sm:$0xf]
  %v585 = vld [vmem:[%s575 + $0x24] sm:$0xf]
  %v586 = vld [vmem:[%s575 + $0x28] sm:$0xf]
  %v587 = vld [vmem:[%s575 + $0x2c] sm:$0xf]
  %v588 = vpack.c.bf16 %v571, %v571
  %v589 = vlaneseq
  %v590 = vshrl.u32 %v589, 7
  %v591 = vsub.s32 0, %v590
  %v592 = vrot.slane %v574, %v591
  %v597 = vunpack.c.l.b16 %v576
  %v598 = vunpack.c.l.b16 %v577
  %v599 = vunpack.c.l.b16 %v578
  %v600 = vunpack.c.l.b16 %v579
  %v601 = vpack.c.b16 %v598, %v597
  %v602 = vpack.c.b16 %v600, %v599
  %v606 = vsel %vm49, %v588, 0
  %608 = vmatprep.subr.bf16.mxu0 0
  %609 = vmatpush1.bf16.msra.mxu0 0
  %610 = vmatprep.subr.bf16.mxu0 0
  %611 = vmatpush1.bf16.msra.mxu0 0
  %612 = vmatprep.subr.bf16.mxu0 0
  %613 = vmatpush1.bf16.msra.mxu0 0
  %614 = vmatprep.subr.bf16.mxu0 0
  %615 = vmatpush1.bf16.msra.mxu0 0
  %616 = vmatprep.subr.bf16.mxu0 0
  %617 = vmatpush1.bf16.msra.mxu0 0
  %618 = vmatprep.subr.bf16.mxu0 0
  %619 = vmatpush1.bf16.msra.mxu0 0
  %620 = vmatprep.subr.bf16.mxu0 0
  %621 = vmatpush1.bf16.msra.mxu0 %v602
  %622 = vmatprep.subr.bf16.mxu0 0
  %623 = vmatpush1.bf16.msra.mxu0 %v601
  %624 = vmatprep.subr.bf16.mxu0 0
  %625 = vmatpush2.bf16.msra.mxu0 0
  %626 = vmatprep.subr.bf16.mxu0 0
  %627 = vmatpush2.bf16.msra.mxu0 0
  %628 = vmatprep.subr.bf16.mxu0 0
  %629 = vmatpush2.bf16.msra.mxu0 0
  %630 = vmatprep.subr.bf16.mxu0 0
  %631 = vmatpush2.bf16.msra.mxu0 0
  %632 = vmatprep.subr.bf16.mxu0 0
  %633 = vmatpush2.bf16.msra.mxu0 0
  %634 = vmatprep.subr.bf16.mxu0 0
  %635 = vmatpush2.bf16.msra.mxu0 0
  %636 = vmatprep.subr.bf16.mxu0 0
  %637 = vmatpush2.bf16.msra.mxu0 0
  %638 = vmatprep.subr.bf16.mxu0 0
  %639 = vmatpush2.bf16.msra.mxu0 0
  %640 = vmatprep.mubr.bf16.mxu0 0
  %641 = vmatmul.mubr.bf16.gmra.mxu0 %v606
  %v642 = vpop.f32.mrf.mxu0
  %v643 = vadd.f32 %v592, %v642
  %v644 = vpop.f32.mrf.mxu0
  %v645 = vpop.f32.mrf.mxu0
  %v646 = vpop.f32.mrf.mxu0
  %647 = vdwg.mxu0
  %v648 = vmax.f32 %v643, 0.0
  %v649 = vpack.c.bf16 %v648, %v648
  %v650 = vlaneseq
  %v651 = vshrl.u32 %v650, 7
  %v652 = vsub.s32 1, %v651
  %v653 = vrot.slane %v574, %v652
  %v658 = vunpack.c.l.b16 %v580
  %v659 = vunpack.c.l.b16 %v581
  %v660 = vunpack.c.l.b16 %v582
  %v661 = vunpack.c.l.b16 %v583
  %v662 = vpack.c.b16 %v659, %v658
  %v663 = vpack.c.b16 %v661, %v660
  %v667 = vsel %vm49, %v649, 0
  %669 = vmatprep.subr.bf16.mxu0 0
  %670 = vmatpush1.bf16.msra.mxu0 0
  %671 = vmatprep.subr.bf16.mxu0 0
  %672 = vmatpush1.bf16.msra.mxu0 0
  %673 = vmatprep.subr.bf16.mxu0 0
  %674 = vmatpush1.bf16.msra.mxu0 0
  %675 = vmatprep.subr.bf16.mxu0 0
  %676 = vmatpush1.bf16.msra.mxu0 0
  %677 = vmatprep.subr.bf16.mxu0 0
  %678 = vmatpush1.bf16.msra.mxu0 0
  %679 = vmatprep.subr.bf16.mxu0 0
  %680 = vmatpush1.bf16.msra.mxu0 0
  %681 = vmatprep.subr.bf16.mxu0 0
  %682 = vmatpush1.bf16.msra.mxu0 %v663
  %683 = vmatprep.subr.bf16.mxu0 0
  %684 = vmatpush1.bf16.msra.mxu0 %v662
  %685 = vmatprep.subr.bf16.mxu0 0
  %686 = vmatpush2.bf16.msra.mxu0 0
  %687 = vmatprep.subr.bf16.mxu0 0
  %688 = vmatpush2.bf16.msra.mxu0 0
  %689 = vmatprep.subr.bf16.mxu0 0
  %690 = vmatpush2.bf16.msra.mxu0 0
  %691 = vmatprep.subr.bf16.mxu0 0
  %692 = vmatpush2.bf16.msra.mxu0 0
  %693 = vmatprep.subr.bf16.mxu0 0
  %694 = vmatpush2.bf16.msra.mxu0 0
  %695 = vmatprep.subr.bf16.mxu0 0
  %696 = vmatpush2.bf16.msra.mxu0 0
  %697 = vmatprep.subr.bf16.mxu0 0
  %698 = vmatpush2.bf16.msra.mxu0 0
  %699 = vmatprep.subr.bf16.mxu0 0
  %700 = vmatpush2.bf16.msra.mxu0 0
  %701 = vmatprep.mubr.bf16.mxu0 0
  %702 = vmatmul.mubr.bf16.gmra.mxu0 %v667
  %v703 = vpop.f32.mrf.mxu0
  %v704 = vadd.f32 %v653, %v703
  %v705 = vpop.f32.mrf.mxu0
  %v706 = vpop.f32.mrf.mxu0
  %v707 = vpop.f32.mrf.mxu0
  %708 = vdwg.mxu0
  %v709 = vmax.f32 %v704, 0.0
  %v710 = vpack.c.bf16 %v709, %v709
  %v711 = vlaneseq
  %v712 = vshrl.u32 %v711, 7
  %v713 = vsub.s32 2, %v712
  %v714 = vrot.slane %v574, %v713
  %v719 = vunpack.c.l.b16 %v584
  %v720 = vunpack.c.l.b16 %v585
  %v721 = vunpack.c.l.b16 %v586
  %v722 = vunpack.c.l.b16 %v587
  %v723 = vpack.c.b16 %v720, %v719
  %v724 = vpack.c.b16 %v722, %v721
  %v728 = vsel %vm49, %v710, 0
  %730 = vmatprep.subr.bf16.mxu0 0
  %731 = vmatpush1.bf16.msra.mxu0 0
  %732 = vmatprep.subr.bf16.mxu0 0
  %733 = vmatpush1.bf16.msra.mxu0 0
  %734 = vmatprep.subr.bf16.mxu0 0
  %735 = vmatpush1.bf16.msra.mxu0 0
  %736 = vmatprep.subr.bf16.mxu0 0
  %737 = vmatpush1.bf16.msra.mxu0 0
  %738 = vmatprep.subr.bf16.mxu0 0
  %739 = vmatpush1.bf16.msra.mxu0 0
  %740 = vmatprep.subr.bf16.mxu0 0
  %741 = vmatpush1.bf16.msra.mxu0 0
  %742 = vmatprep.subr.bf16.mxu0 0
  %743 = vmatpush1.bf16.msra.mxu0 %v724
  %744 = vmatprep.subr.bf16.mxu0 0
  %745 = vmatpush1.bf16.msra.mxu0 %v723
  %746 = vmatprep.subr.bf16.mxu0 0
  %747 = vmatpush2.bf16.msra.mxu0 0
  %748 = vmatprep.subr.bf16.mxu0 0
  %749 = vmatpush2.bf16.msra.mxu0 0
  %750 = vmatprep.subr.bf16.mxu0 0
  %751 = vmatpush2.bf16.msra.mxu0 0
  %752 = vmatprep.subr.bf16.mxu0 0
  %753 = vmatpush2.bf16.msra.mxu0 0
  %754 = vmatprep.subr.bf16.mxu0 0
  %755 = vmatpush2.bf16.msra.mxu0 0
  %756 = vmatprep.subr.bf16.mxu0 0
  %757 = vmatpush2.bf16.msra.mxu0 0
  %758 = vmatprep.subr.bf16.mxu0 0
  %759 = vmatpush2.bf16.msra.mxu0 0
  %760 = vmatprep.subr.bf16.mxu0 0
  %761 = vmatpush2.bf16.msra.mxu0 0
  %762 = vmatprep.mubr.bf16.mxu0 0
  %763 = vmatmul.mubr.bf16.gmra.mxu0 %v728
  %v764 = vpop.f32.mrf.mxu0
  %v765 = vadd.f32 %v714, %v764
  %v766 = vpop.f32.mrf.mxu0
  %v767 = vpop.f32.mrf.mxu0
  %v768 = vpop.f32.mrf.mxu0
  %769 = vdwg.mxu0
  %v770 = vmax.f32 %v765, 0.0
  %v771 = vpack.c.bf16 %v770, %v770
  %s772 = scalar_lea.vmem %s2, 32
  %v773 = vld [vmem:[%s772] sm:$0xf]
  %v774 = vld [vmem:[%s772 + $0x4] sm:$0xf]
  %v775 = vld [vmem:[%s772 + $0x8] sm:$0xf]
  %v776 = vld [vmem:[%s772 + $0xc] sm:$0xf]
  %v777 = vlaneseq
  %v778 = vshrl.u32 %v777, 7
  %v779 = vsub.s32 3, %v778
  %v780 = vrot.slane %v574, %v779
  %v785 = vunpack.c.l.b16 %v773
  %v786 = vunpack.c.l.b16 %v774
  %v787 = vunpack.c.l.b16 %v775
  %v788 = vunpack.c.l.b16 %v776
  %v789 = vpack.c.b16 %v786, %v785
  %v790 = vpack.c.b16 %v788, %v787
  %v794 = vsel %vm49, %v771, 0
  %796 = vmatprep.subr.bf16.mxu0 0
  %797 = vmatpush1.bf16.msra.mxu0 0
  %798 = vmatprep.subr.bf16.mxu0 0
  %799 = vmatpush1.bf16.msra.mxu0 0
  %800 = vmatprep.subr.bf16.mxu0 0
  %801 = vmatpush1.bf16.msra.mxu0 0
  %802 = vmatprep.subr.bf16.mxu0 0
  %803 = vmatpush1.bf16.msra.mxu0 0
  %804 = vmatprep.subr.bf16.mxu0 0
  %805 = vmatpush1.bf16.msra.mxu0 0
  %806 = vmatprep.subr.bf16.mxu0 0
  %807 = vmatpush1.bf16.msra.mxu0 0
  %808 = vmatprep.subr.bf16.mxu0 0
  %809 = vmatpush1.bf16.msra.mxu0 %v790
  %810 = vmatprep.subr.bf16.mxu0 0
  %811 = vmatpush1.bf16.msra.mxu0 %v789
  %812 = vmatprep.subr.bf16.mxu0 0
  %813 = vmatpush2.bf16.msra.mxu0 0
  %814 = vmatprep.subr.bf16.mxu0 0
  %815 = vmatpush2.bf16.msra.mxu0 0
  %816 = vmatprep.subr.bf16.mxu0 0
  %817 = vmatpush2.bf16.msra.mxu0 0
  %818 = vmatprep.subr.bf16.mxu0 0
  %819 = vmatpush2.bf16.msra.mxu0 0
  %820 = vmatprep.subr.bf16.mxu0 0
  %821 = vmatpush2.bf16.msra.mxu0 0
  %822 = vmatprep.subr.bf16.mxu0 0
  %823 = vmatpush2.bf16.msra.mxu0 0
  %824 = vmatprep.subr.bf16.mxu0 0
  %825 = vmatpush2.bf16.msra.mxu0 0
  %826 = vmatprep.subr.bf16.mxu0 0
  %827 = vmatpush2.bf16.msra.mxu0 0
  %828 = vmatprep.mubr.bf16.mxu0 0
  %829 = vmatmul.mubr.bf16.gmra.mxu0 %v794
  %v830 = vpop.f32.mrf.mxu0
  %v831 = vadd.f32 %v780, %v830
  %v832 = vpop.f32.mrf.mxu0
  %v833 = vpop.f32.mrf.mxu0
  %v834 = vpop.f32.mrf.mxu0
  %835 = vdwg.mxu0
  %v836 = vlaneseq
  %v837 = vshrl.u32 %v836, 7
  %v838 = vsub.s32 4, %v837
  %v839 = vrot.slane %v574, %v838
  %v840 = vmul.f32 %v770, %v839
  %v841 = vsel %vm49, %v840, 0.0
  %842 = vadd.xlane.f32.xlu0 %v841
  %v843 = vpop.xlane.xlu0 %842
  %v844 = vlaneseq
  %v845 = vshrl.u32 %v844, 7
  %v846 = vsub.s32 5, %v845
  %v847 = vrot.slane %v574, %v846
  %v848 = vadd.f32 %v843, %v847
  %v849 = vsub.f32 %v571, %v831
  %v850 = vadd.f32 %v572, %v848
  %s851 = scalar_lea.vmem %s3, 24
  %v852 = vld [vmem:[%s851] sm:$0x3f]
  %s853 = scalar_lea.vmem %s1, 144
  %v854 = vld [vmem:[%s853] sm:$0xf]
  %v855 = vld [vmem:[%s853 + $0x4] sm:$0xf]
  %v856 = vld [vmem:[%s853 + $0x8] sm:$0xf]
  %v857 = vld [vmem:[%s853 + $0xc] sm:$0xf]
  %v858 = vld [vmem:[%s853 + $0x10] sm:$0xf]
  %v859 = vld [vmem:[%s853 + $0x14] sm:$0xf]
  %v860 = vld [vmem:[%s853 + $0x18] sm:$0xf]
  %v861 = vld [vmem:[%s853 + $0x1c] sm:$0xf]
  %v862 = vld [vmem:[%s853 + $0x20] sm:$0xf]
  %v863 = vld [vmem:[%s853 + $0x24] sm:$0xf]
  %v864 = vld [vmem:[%s853 + $0x28] sm:$0xf]
  %v865 = vld [vmem:[%s853 + $0x2c] sm:$0xf]
  %v866 = vpack.c.bf16 %v849, %v849
  %v867 = vlaneseq
  %v868 = vshrl.u32 %v867, 7
  %v869 = vsub.s32 0, %v868
  %v870 = vrot.slane %v852, %v869
  %v875 = vunpack.c.l.b16 %v854
  %v876 = vunpack.c.l.b16 %v855
  %v877 = vunpack.c.l.b16 %v856
  %v878 = vunpack.c.l.b16 %v857
  %v879 = vpack.c.b16 %v876, %v875
  %v880 = vpack.c.b16 %v878, %v877
  %v884 = vsel %vm49, %v866, 0
  %886 = vmatprep.subr.bf16.mxu0 0
  %887 = vmatpush1.bf16.msra.mxu0 0
  %888 = vmatprep.subr.bf16.mxu0 0
  %889 = vmatpush1.bf16.msra.mxu0 0
  %890 = vmatprep.subr.bf16.mxu0 0
  %891 = vmatpush1.bf16.msra.mxu0 0
  %892 = vmatprep.subr.bf16.mxu0 0
  %893 = vmatpush1.bf16.msra.mxu0 0
  %894 = vmatprep.subr.bf16.mxu0 0
  %895 = vmatpush1.bf16.msra.mxu0 0
  %896 = vmatprep.subr.bf16.mxu0 0
  %897 = vmatpush1.bf16.msra.mxu0 0
  %898 = vmatprep.subr.bf16.mxu0 0
  %899 = vmatpush1.bf16.msra.mxu0 %v880
  %900 = vmatprep.subr.bf16.mxu0 0
  %901 = vmatpush1.bf16.msra.mxu0 %v879
  %902 = vmatprep.subr.bf16.mxu0 0
  %903 = vmatpush2.bf16.msra.mxu0 0
  %904 = vmatprep.subr.bf16.mxu0 0
  %905 = vmatpush2.bf16.msra.mxu0 0
  %906 = vmatprep.subr.bf16.mxu0 0
  %907 = vmatpush2.bf16.msra.mxu0 0
  %908 = vmatprep.subr.bf16.mxu0 0
  %909 = vmatpush2.bf16.msra.mxu0 0
  %910 = vmatprep.subr.bf16.mxu0 0
  %911 = vmatpush2.bf16.msra.mxu0 0
  %912 = vmatprep.subr.bf16.mxu0 0
  %913 = vmatpush2.bf16.msra.mxu0 0
  %914 = vmatprep.subr.bf16.mxu0 0
  %915 = vmatpush2.bf16.msra.mxu0 0
  %916 = vmatprep.subr.bf16.mxu0 0
  %917 = vmatpush2.bf16.msra.mxu0 0
  %918 = vmatprep.mubr.bf16.mxu0 0
  %919 = vmatmul.mubr.bf16.gmra.mxu0 %v884
  %v920 = vpop.f32.mrf.mxu0
  %v921 = vadd.f32 %v870, %v920
  %v922 = vpop.f32.mrf.mxu0
  %v923 = vpop.f32.mrf.mxu0
  %v924 = vpop.f32.mrf.mxu0
  %925 = vdwg.mxu0
  %v926 = vmax.f32 %v921, 0.0
  %v927 = vpack.c.bf16 %v926, %v926
  %v928 = vlaneseq
  %v929 = vshrl.u32 %v928, 7
  %v930 = vsub.s32 1, %v929
  %v931 = vrot.slane %v852, %v930
  %v936 = vunpack.c.l.b16 %v858
  %v937 = vunpack.c.l.b16 %v859
  %v938 = vunpack.c.l.b16 %v860
  %v939 = vunpack.c.l.b16 %v861
  %v940 = vpack.c.b16 %v937, %v936
  %v941 = vpack.c.b16 %v939, %v938
  %v945 = vsel %vm49, %v927, 0
  %947 = vmatprep.subr.bf16.mxu0 0
  %948 = vmatpush1.bf16.msra.mxu0 0
  %949 = vmatprep.subr.bf16.mxu0 0
  %950 = vmatpush1.bf16.msra.mxu0 0
  %951 = vmatprep.subr.bf16.mxu0 0
  %952 = vmatpush1.bf16.msra.mxu0 0
  %953 = vmatprep.subr.bf16.mxu0 0
  %954 = vmatpush1.bf16.msra.mxu0 0
  %955 = vmatprep.subr.bf16.mxu0 0
  %956 = vmatpush1.bf16.msra.mxu0 0
  %957 = vmatprep.subr.bf16.mxu0 0
  %958 = vmatpush1.bf16.msra.mxu0 0
  %959 = vmatprep.subr.bf16.mxu0 0
  %960 = vmatpush1.bf16.msra.mxu0 %v941
  %961 = vmatprep.subr.bf16.mxu0 0
  %962 = vmatpush1.bf16.msra.mxu0 %v940
  %963 = vmatprep.subr.bf16.mxu0 0
  %964 = vmatpush2.bf16.msra.mxu0 0
  %965 = vmatprep.subr.bf16.mxu0 0
  %966 = vmatpush2.bf16.msra.mxu0 0
  %967 = vmatprep.subr.bf16.mxu0 0
  %968 = vmatpush2.bf16.msra.mxu0 0
  %969 = vmatprep.subr.bf16.mxu0 0
  %970 = vmatpush2.bf16.msra.mxu0 0
  %971 = vmatprep.subr.bf16.mxu0 0
  %972 = vmatpush2.bf16.msra.mxu0 0
  %973 = vmatprep.subr.bf16.mxu0 0
  %974 = vmatpush2.bf16.msra.mxu0 0
  %975 = vmatprep.subr.bf16.mxu0 0
  %976 = vmatpush2.bf16.msra.mxu0 0
  %977 = vmatprep.subr.bf16.mxu0 0
  %978 = vmatpush2.bf16.msra.mxu0 0
  %979 = vmatprep.mubr.bf16.mxu0 0
  %980 = vmatmul.mubr.bf16.gmra.mxu0 %v945
  %v981 = vpop.f32.mrf.mxu0
  %v982 = vadd.f32 %v931, %v981
  %v983 = vpop.f32.mrf.mxu0
  %v984 = vpop.f32.mrf.mxu0
  %v985 = vpop.f32.mrf.mxu0
  %986 = vdwg.mxu0
  %v987 = vmax.f32 %v982, 0.0
  %v988 = vpack.c.bf16 %v987, %v987
  %v989 = vlaneseq
  %v990 = vshrl.u32 %v989, 7
  %v991 = vsub.s32 2, %v990
  %v992 = vrot.slane %v852, %v991
  %v997 = vunpack.c.l.b16 %v862
  %v998 = vunpack.c.l.b16 %v863
  %v999 = vunpack.c.l.b16 %v864
  %v1000 = vunpack.c.l.b16 %v865
  %v1001 = vpack.c.b16 %v998, %v997
  %v1002 = vpack.c.b16 %v1000, %v999
  %v1006 = vsel %vm49, %v988, 0
  %1008 = vmatprep.subr.bf16.mxu0 0
  %1009 = vmatpush1.bf16.msra.mxu0 0
  %1010 = vmatprep.subr.bf16.mxu0 0
  %1011 = vmatpush1.bf16.msra.mxu0 0
  %1012 = vmatprep.subr.bf16.mxu0 0
  %1013 = vmatpush1.bf16.msra.mxu0 0
  %1014 = vmatprep.subr.bf16.mxu0 0
  %1015 = vmatpush1.bf16.msra.mxu0 0
  %1016 = vmatprep.subr.bf16.mxu0 0
  %1017 = vmatpush1.bf16.msra.mxu0 0
  %1018 = vmatprep.subr.bf16.mxu0 0
  %1019 = vmatpush1.bf16.msra.mxu0 0
  %1020 = vmatprep.subr.bf16.mxu0 0
  %1021 = vmatpush1.bf16.msra.mxu0 %v1002
  %1022 = vmatprep.subr.bf16.mxu0 0
  %1023 = vmatpush1.bf16.msra.mxu0 %v1001
  %1024 = vmatprep.subr.bf16.mxu0 0
  %1025 = vmatpush2.bf16.msra.mxu0 0
  %1026 = vmatprep.subr.bf16.mxu0 0
  %1027 = vmatpush2.bf16.msra.mxu0 0
  %1028 = vmatprep.subr.bf16.mxu0 0
  %1029 = vmatpush2.bf16.msra.mxu0 0
  %1030 = vmatprep.subr.bf16.mxu0 0
  %1031 = vmatpush2.bf16.msra.mxu0 0
  %1032 = vmatprep.subr.bf16.mxu0 0
  %1033 = vmatpush2.bf16.msra.mxu0 0
  %1034 = vmatprep.subr.bf16.mxu0 0
  %1035 = vmatpush2.bf16.msra.mxu0 0
  %1036 = vmatprep.subr.bf16.mxu0 0
  %1037 = vmatpush2.bf16.msra.mxu0 0
  %1038 = vmatprep.subr.bf16.mxu0 0
  %1039 = vmatpush2.bf16.msra.mxu0 0
  %1040 = vmatprep.mubr.bf16.mxu0 0
  %1041 = vmatmul.mubr.bf16.gmra.mxu0 %v1006
  %v1042 = vpop.f32.mrf.mxu0
  %v1043 = vadd.f32 %v992, %v1042
  %v1044 = vpop.f32.mrf.mxu0
  %v1045 = vpop.f32.mrf.mxu0
  %v1046 = vpop.f32.mrf.mxu0
  %1047 = vdwg.mxu0
  %v1048 = vmax.f32 %v1043, 0.0
  %v1049 = vpack.c.bf16 %v1048, %v1048
  %s1050 = scalar_lea.vmem %s2, 48
  %v1051 = vld [vmem:[%s1050] sm:$0xf]
  %v1052 = vld [vmem:[%s1050 + $0x4] sm:$0xf]
  %v1053 = vld [vmem:[%s1050 + $0x8] sm:$0xf]
  %v1054 = vld [vmem:[%s1050 + $0xc] sm:$0xf]
  %v1055 = vlaneseq
  %v1056 = vshrl.u32 %v1055, 7
  %v1057 = vsub.s32 3, %v1056
  %v1058 = vrot.slane %v852, %v1057
  %v1063 = vunpack.c.l.b16 %v1051
  %v1064 = vunpack.c.l.b16 %v1052
  %v1065 = vunpack.c.l.b16 %v1053
  %v1066 = vunpack.c.l.b16 %v1054
  %v1067 = vpack.c.b16 %v1064, %v1063
  %v1068 = vpack.c.b16 %v1066, %v1065
  %v1072 = vsel %vm49, %v1049, 0
  %1074 = vmatprep.subr.bf16.mxu0 0
  %1075 = vmatpush1.bf16.msra.mxu0 0
  %1076 = vmatprep.subr.bf16.mxu0 0
  %1077 = vmatpush1.bf16.msra.mxu0 0
  %1078 = vmatprep.subr.bf16.mxu0 0
  %1079 = vmatpush1.bf16.msra.mxu0 0
  %1080 = vmatprep.subr.bf16.mxu0 0
  %1081 = vmatpush1.bf16.msra.mxu0 0
  %1082 = vmatprep.subr.bf16.mxu0 0
  %1083 = vmatpush1.bf16.msra.mxu0 0
  %1084 = vmatprep.subr.bf16.mxu0 0
  %1085 = vmatpush1.bf16.msra.mxu0 0
  %1086 = vmatprep.subr.bf16.mxu0 0
  %1087 = vmatpush1.bf16.msra.mxu0 %v1068
  %1088 = vmatprep.subr.bf16.mxu0 0
  %1089 = vmatpush1.bf16.msra.mxu0 %v1067
  %1090 = vmatprep.subr.bf16.mxu0 0
  %1091 = vmatpush2.bf16.msra.mxu0 0
  %1092 = vmatprep.subr.bf16.mxu0 0
  %1093 = vmatpush2.bf16.msra.mxu0 0
  %1094 = vmatprep.subr.bf16.mxu0 0
  %1095 = vmatpush2.bf16.msra.mxu0 0
  %1096 = vmatprep.subr.bf16.mxu0 0
  %1097 = vmatpush2.bf16.msra.mxu0 0
  %1098 = vmatprep.subr.bf16.mxu0 0
  %1099 = vmatpush2.bf16.msra.mxu0 0
  %1100 = vmatprep.subr.bf16.mxu0 0
  %1101 = vmatpush2.bf16.msra.mxu0 0
  %1102 = vmatprep.subr.bf16.mxu0 0
  %1103 = vmatpush2.bf16.msra.mxu0 0
  %1104 = vmatprep.subr.bf16.mxu0 0
  %1105 = vmatpush2.bf16.msra.mxu0 0
  %1106 = vmatprep.mubr.bf16.mxu0 0
  %1107 = vmatmul.mubr.bf16.gmra.mxu0 %v1072
  %v1108 = vpop.f32.mrf.mxu0
  %v1109 = vadd.f32 %v1058, %v1108
  %v1110 = vpop.f32.mrf.mxu0
  %v1111 = vpop.f32.mrf.mxu0
  %v1112 = vpop.f32.mrf.mxu0
  %1113 = vdwg.mxu0
  %v1114 = vlaneseq
  %v1115 = vshrl.u32 %v1114, 7
  %v1116 = vsub.s32 4, %v1115
  %v1117 = vrot.slane %v852, %v1116
  %v1118 = vmul.f32 %v1048, %v1117
  %v1119 = vsel %vm49, %v1118, 0.0
  %1120 = vadd.xlane.f32.xlu0 %v1119
  %v1121 = vpop.xlane.xlu0 %1120
  %v1122 = vlaneseq
  %v1123 = vshrl.u32 %v1122, 7
  %v1124 = vsub.s32 5, %v1123
  %v1125 = vrot.slane %v852, %v1124
  %v1126 = vadd.f32 %v1121, %v1125
  %v1127 = vsub.f32 %v849, %v1109
  %v1128 = vadd.f32 %v850, %v1126
  %s1129 = scalar_lea.vmem %s3, 32
  %v1130 = vld [vmem:[%s1129] sm:$0x3f]
  %s1131 = scalar_lea.vmem %s1, 192
  %v1132 = vld [vmem:[%s1131] sm:$0xf]
  %v1133 = vld [vmem:[%s1131 + $0x4] sm:$0xf]
  %v1134 = vld [vmem:[%s1131 + $0x8] sm:$0xf]
  %v1135 = vld [vmem:[%s1131 + $0xc] sm:$0xf]
  %v1136 = vld [vmem:[%s1131 + $0x10] sm:$0xf]
  %v1137 = vld [vmem:[%s1131 + $0x14] sm:$0xf]
  %v1138 = vld [vmem:[%s1131 + $0x18] sm:$0xf]
  %v1139 = vld [vmem:[%s1131 + $0x1c] sm:$0xf]
  %v1140 = vld [vmem:[%s1131 + $0x20] sm:$0xf]
  %v1141 = vld [vmem:[%s1131 + $0x24] sm:$0xf]
  %v1142 = vld [vmem:[%s1131 + $0x28] sm:$0xf]
  %v1143 = vld [vmem:[%s1131 + $0x2c] sm:$0xf]
  %v1144 = vpack.c.bf16 %v1127, %v1127
  %v1145 = vlaneseq
  %v1146 = vshrl.u32 %v1145, 7
  %v1147 = vsub.s32 0, %v1146
  %v1148 = vrot.slane %v1130, %v1147
  %v1153 = vunpack.c.l.b16 %v1132
  %v1154 = vunpack.c.l.b16 %v1133
  %v1155 = vunpack.c.l.b16 %v1134
  %v1156 = vunpack.c.l.b16 %v1135
  %v1157 = vpack.c.b16 %v1154, %v1153
  %v1158 = vpack.c.b16 %v1156, %v1155
  %v1162 = vsel %vm49, %v1144, 0
  %1164 = vmatprep.subr.bf16.mxu0 0
  %1165 = vmatpush1.bf16.msra.mxu0 0
  %1166 = vmatprep.subr.bf16.mxu0 0
  %1167 = vmatpush1.bf16.msra.mxu0 0
  %1168 = vmatprep.subr.bf16.mxu0 0
  %1169 = vmatpush1.bf16.msra.mxu0 0
  %1170 = vmatprep.subr.bf16.mxu0 0
  %1171 = vmatpush1.bf16.msra.mxu0 0
  %1172 = vmatprep.subr.bf16.mxu0 0
  %1173 = vmatpush1.bf16.msra.mxu0 0
  %1174 = vmatprep.subr.bf16.mxu0 0
  %1175 = vmatpush1.bf16.msra.mxu0 0
  %1176 = vmatprep.subr.bf16.mxu0 0
  %1177 = vmatpush1.bf16.msra.mxu0 %v1158
  %1178 = vmatprep.subr.bf16.mxu0 0
  %1179 = vmatpush1.bf16.msra.mxu0 %v1157
  %1180 = vmatprep.subr.bf16.mxu0 0
  %1181 = vmatpush2.bf16.msra.mxu0 0
  %1182 = vmatprep.subr.bf16.mxu0 0
  %1183 = vmatpush2.bf16.msra.mxu0 0
  %1184 = vmatprep.subr.bf16.mxu0 0
  %1185 = vmatpush2.bf16.msra.mxu0 0
  %1186 = vmatprep.subr.bf16.mxu0 0
  %1187 = vmatpush2.bf16.msra.mxu0 0
  %1188 = vmatprep.subr.bf16.mxu0 0
  %1189 = vmatpush2.bf16.msra.mxu0 0
  %1190 = vmatprep.subr.bf16.mxu0 0
  %1191 = vmatpush2.bf16.msra.mxu0 0
  %1192 = vmatprep.subr.bf16.mxu0 0
  %1193 = vmatpush2.bf16.msra.mxu0 0
  %1194 = vmatprep.subr.bf16.mxu0 0
  %1195 = vmatpush2.bf16.msra.mxu0 0
  %1196 = vmatprep.mubr.bf16.mxu0 0
  %1197 = vmatmul.mubr.bf16.gmra.mxu0 %v1162
  %v1198 = vpop.f32.mrf.mxu0
  %v1199 = vadd.f32 %v1148, %v1198
  %v1200 = vpop.f32.mrf.mxu0
  %v1201 = vpop.f32.mrf.mxu0
  %v1202 = vpop.f32.mrf.mxu0
  %1203 = vdwg.mxu0
  %v1204 = vmax.f32 %v1199, 0.0
  %v1205 = vpack.c.bf16 %v1204, %v1204
  %v1206 = vlaneseq
  %v1207 = vshrl.u32 %v1206, 7
  %v1208 = vsub.s32 1, %v1207
  %v1209 = vrot.slane %v1130, %v1208
  %v1214 = vunpack.c.l.b16 %v1136
  %v1215 = vunpack.c.l.b16 %v1137
  %v1216 = vunpack.c.l.b16 %v1138
  %v1217 = vunpack.c.l.b16 %v1139
  %v1218 = vpack.c.b16 %v1215, %v1214
  %v1219 = vpack.c.b16 %v1217, %v1216
  %v1223 = vsel %vm49, %v1205, 0
  %1225 = vmatprep.subr.bf16.mxu0 0
  %1226 = vmatpush1.bf16.msra.mxu0 0
  %1227 = vmatprep.subr.bf16.mxu0 0
  %1228 = vmatpush1.bf16.msra.mxu0 0
  %1229 = vmatprep.subr.bf16.mxu0 0
  %1230 = vmatpush1.bf16.msra.mxu0 0
  %1231 = vmatprep.subr.bf16.mxu0 0
  %1232 = vmatpush1.bf16.msra.mxu0 0
  %1233 = vmatprep.subr.bf16.mxu0 0
  %1234 = vmatpush1.bf16.msra.mxu0 0
  %1235 = vmatprep.subr.bf16.mxu0 0
  %1236 = vmatpush1.bf16.msra.mxu0 0
  %1237 = vmatprep.subr.bf16.mxu0 0
  %1238 = vmatpush1.bf16.msra.mxu0 %v1219
  %1239 = vmatprep.subr.bf16.mxu0 0
  %1240 = vmatpush1.bf16.msra.mxu0 %v1218
  %1241 = vmatprep.subr.bf16.mxu0 0
  %1242 = vmatpush2.bf16.msra.mxu0 0
  %1243 = vmatprep.subr.bf16.mxu0 0
  %1244 = vmatpush2.bf16.msra.mxu0 0
  %1245 = vmatprep.subr.bf16.mxu0 0
  %1246 = vmatpush2.bf16.msra.mxu0 0
  %1247 = vmatprep.subr.bf16.mxu0 0
  %1248 = vmatpush2.bf16.msra.mxu0 0
  %1249 = vmatprep.subr.bf16.mxu0 0
  %1250 = vmatpush2.bf16.msra.mxu0 0
  %1251 = vmatprep.subr.bf16.mxu0 0
  %1252 = vmatpush2.bf16.msra.mxu0 0
  %1253 = vmatprep.subr.bf16.mxu0 0
  %1254 = vmatpush2.bf16.msra.mxu0 0
  %1255 = vmatprep.subr.bf16.mxu0 0
  %1256 = vmatpush2.bf16.msra.mxu0 0
  %1257 = vmatprep.mubr.bf16.mxu0 0
  %1258 = vmatmul.mubr.bf16.gmra.mxu0 %v1223
  %v1259 = vpop.f32.mrf.mxu0
  %v1260 = vadd.f32 %v1209, %v1259
  %v1261 = vpop.f32.mrf.mxu0
  %v1262 = vpop.f32.mrf.mxu0
  %v1263 = vpop.f32.mrf.mxu0
  %1264 = vdwg.mxu0
  %v1265 = vmax.f32 %v1260, 0.0
  %v1266 = vpack.c.bf16 %v1265, %v1265
  %v1267 = vlaneseq
  %v1268 = vshrl.u32 %v1267, 7
  %v1269 = vsub.s32 2, %v1268
  %v1270 = vrot.slane %v1130, %v1269
  %v1275 = vunpack.c.l.b16 %v1140
  %v1276 = vunpack.c.l.b16 %v1141
  %v1277 = vunpack.c.l.b16 %v1142
  %v1278 = vunpack.c.l.b16 %v1143
  %v1279 = vpack.c.b16 %v1276, %v1275
  %v1280 = vpack.c.b16 %v1278, %v1277
  %v1284 = vsel %vm49, %v1266, 0
  %1286 = vmatprep.subr.bf16.mxu0 0
  %1287 = vmatpush1.bf16.msra.mxu0 0
  %1288 = vmatprep.subr.bf16.mxu0 0
  %1289 = vmatpush1.bf16.msra.mxu0 0
  %1290 = vmatprep.subr.bf16.mxu0 0
  %1291 = vmatpush1.bf16.msra.mxu0 0
  %1292 = vmatprep.subr.bf16.mxu0 0
  %1293 = vmatpush1.bf16.msra.mxu0 0
  %1294 = vmatprep.subr.bf16.mxu0 0
  %1295 = vmatpush1.bf16.msra.mxu0 0
  %1296 = vmatprep.subr.bf16.mxu0 0
  %1297 = vmatpush1.bf16.msra.mxu0 0
  %1298 = vmatprep.subr.bf16.mxu0 0
  %1299 = vmatpush1.bf16.msra.mxu0 %v1280
  %1300 = vmatprep.subr.bf16.mxu0 0
  %1301 = vmatpush1.bf16.msra.mxu0 %v1279
  %1302 = vmatprep.subr.bf16.mxu0 0
  %1303 = vmatpush2.bf16.msra.mxu0 0
  %1304 = vmatprep.subr.bf16.mxu0 0
  %1305 = vmatpush2.bf16.msra.mxu0 0
  %1306 = vmatprep.subr.bf16.mxu0 0
  %1307 = vmatpush2.bf16.msra.mxu0 0
  %1308 = vmatprep.subr.bf16.mxu0 0
  %1309 = vmatpush2.bf16.msra.mxu0 0
  %1310 = vmatprep.subr.bf16.mxu0 0
  %1311 = vmatpush2.bf16.msra.mxu0 0
  %1312 = vmatprep.subr.bf16.mxu0 0
  %1313 = vmatpush2.bf16.msra.mxu0 0
  %1314 = vmatprep.subr.bf16.mxu0 0
  %1315 = vmatpush2.bf16.msra.mxu0 0
  %1316 = vmatprep.subr.bf16.mxu0 0
  %1317 = vmatpush2.bf16.msra.mxu0 0
  %1318 = vmatprep.mubr.bf16.mxu0 0
  %1319 = vmatmul.mubr.bf16.gmra.mxu0 %v1284
  %v1320 = vpop.f32.mrf.mxu0
  %v1321 = vadd.f32 %v1270, %v1320
  %v1322 = vpop.f32.mrf.mxu0
  %v1323 = vpop.f32.mrf.mxu0
  %v1324 = vpop.f32.mrf.mxu0
  %1325 = vdwg.mxu0
  %v1326 = vmax.f32 %v1321, 0.0
  %v1327 = vpack.c.bf16 %v1326, %v1326
  %s1328 = scalar_lea.vmem %s2, 64
  %v1329 = vld [vmem:[%s1328] sm:$0xf]
  %v1330 = vld [vmem:[%s1328 + $0x4] sm:$0xf]
  %v1331 = vld [vmem:[%s1328 + $0x8] sm:$0xf]
  %v1332 = vld [vmem:[%s1328 + $0xc] sm:$0xf]
  %v1333 = vlaneseq
  %v1334 = vshrl.u32 %v1333, 7
  %v1335 = vsub.s32 3, %v1334
  %v1336 = vrot.slane %v1130, %v1335
  %v1341 = vunpack.c.l.b16 %v1329
  %v1342 = vunpack.c.l.b16 %v1330
  %v1343 = vunpack.c.l.b16 %v1331
  %v1344 = vunpack.c.l.b16 %v1332
  %v1345 = vpack.c.b16 %v1342, %v1341
  %v1346 = vpack.c.b16 %v1344, %v1343
  %v1350 = vsel %vm49, %v1327, 0
  %1352 = vmatprep.subr.bf16.mxu0 0
  %1353 = vmatpush1.bf16.msra.mxu0 0
  %1354 = vmatprep.subr.bf16.mxu0 0
  %1355 = vmatpush1.bf16.msra.mxu0 0
  %1356 = vmatprep.subr.bf16.mxu0 0
  %1357 = vmatpush1.bf16.msra.mxu0 0
  %1358 = vmatprep.subr.bf16.mxu0 0
  %1359 = vmatpush1.bf16.msra.mxu0 0
  %1360 = vmatprep.subr.bf16.mxu0 0
  %1361 = vmatpush1.bf16.msra.mxu0 0
  %1362 = vmatprep.subr.bf16.mxu0 0
  %1363 = vmatpush1.bf16.msra.mxu0 0
  %1364 = vmatprep.subr.bf16.mxu0 0
  %1365 = vmatpush1.bf16.msra.mxu0 %v1346
  %1366 = vmatprep.subr.bf16.mxu0 0
  %1367 = vmatpush1.bf16.msra.mxu0 %v1345
  %1368 = vmatprep.subr.bf16.mxu0 0
  %1369 = vmatpush2.bf16.msra.mxu0 0
  %1370 = vmatprep.subr.bf16.mxu0 0
  %1371 = vmatpush2.bf16.msra.mxu0 0
  %1372 = vmatprep.subr.bf16.mxu0 0
  %1373 = vmatpush2.bf16.msra.mxu0 0
  %1374 = vmatprep.subr.bf16.mxu0 0
  %1375 = vmatpush2.bf16.msra.mxu0 0
  %1376 = vmatprep.subr.bf16.mxu0 0
  %1377 = vmatpush2.bf16.msra.mxu0 0
  %1378 = vmatprep.subr.bf16.mxu0 0
  %1379 = vmatpush2.bf16.msra.mxu0 0
  %1380 = vmatprep.subr.bf16.mxu0 0
  %1381 = vmatpush2.bf16.msra.mxu0 0
  %1382 = vmatprep.subr.bf16.mxu0 0
  %1383 = vmatpush2.bf16.msra.mxu0 0
  %1384 = vmatprep.mubr.bf16.mxu0 0
  %1385 = vmatmul.mubr.bf16.gmra.mxu0 %v1350
  %v1386 = vpop.f32.mrf.mxu0
  %v1387 = vadd.f32 %v1336, %v1386
  %v1388 = vpop.f32.mrf.mxu0
  %v1389 = vpop.f32.mrf.mxu0
  %v1390 = vpop.f32.mrf.mxu0
  %1391 = vdwg.mxu0
  %v1392 = vlaneseq
  %v1393 = vshrl.u32 %v1392, 7
  %v1394 = vsub.s32 4, %v1393
  %v1395 = vrot.slane %v1130, %v1394
  %v1396 = vmul.f32 %v1326, %v1395
  %v1397 = vsel %vm49, %v1396, 0.0
  %1398 = vadd.xlane.f32.xlu0 %v1397
  %v1399 = vpop.xlane.xlu0 %1398
  %v1400 = vlaneseq
  %v1401 = vshrl.u32 %v1400, 7
  %v1402 = vsub.s32 5, %v1401
  %v1403 = vrot.slane %v1130, %v1402
  %v1404 = vadd.f32 %v1399, %v1403
  %v1405 = vsub.f32 %v1127, %v1387
  %v1406 = vadd.f32 %v1128, %v1404
  %s1407 = scalar_lea.vmem %s3, 40
  %v1408 = vld [vmem:[%s1407] sm:$0x3f]
  %s1409 = scalar_lea.vmem %s1, 240
  %v1410 = vld [vmem:[%s1409] sm:$0xf]
  %v1411 = vld [vmem:[%s1409 + $0x4] sm:$0xf]
  %v1412 = vld [vmem:[%s1409 + $0x8] sm:$0xf]
  %v1413 = vld [vmem:[%s1409 + $0xc] sm:$0xf]
  %v1414 = vld [vmem:[%s1409 + $0x10] sm:$0xf]
  %v1415 = vld [vmem:[%s1409 + $0x14] sm:$0xf]
  %v1416 = vld [vmem:[%s1409 + $0x18] sm:$0xf]
  %v1417 = vld [vmem:[%s1409 + $0x1c] sm:$0xf]
  %v1418 = vld [vmem:[%s1409 + $0x20] sm:$0xf]
  %v1419 = vld [vmem:[%s1409 + $0x24] sm:$0xf]
  %v1420 = vld [vmem:[%s1409 + $0x28] sm:$0xf]
  %v1421 = vld [vmem:[%s1409 + $0x2c] sm:$0xf]
  %v1422 = vpack.c.bf16 %v1405, %v1405
  %v1423 = vlaneseq
  %v1424 = vshrl.u32 %v1423, 7
  %v1425 = vsub.s32 0, %v1424
  %v1426 = vrot.slane %v1408, %v1425
  %v1431 = vunpack.c.l.b16 %v1410
  %v1432 = vunpack.c.l.b16 %v1411
  %v1433 = vunpack.c.l.b16 %v1412
  %v1434 = vunpack.c.l.b16 %v1413
  %v1435 = vpack.c.b16 %v1432, %v1431
  %v1436 = vpack.c.b16 %v1434, %v1433
  %v1440 = vsel %vm49, %v1422, 0
  %1442 = vmatprep.subr.bf16.mxu0 0
  %1443 = vmatpush1.bf16.msra.mxu0 0
  %1444 = vmatprep.subr.bf16.mxu0 0
  %1445 = vmatpush1.bf16.msra.mxu0 0
  %1446 = vmatprep.subr.bf16.mxu0 0
  %1447 = vmatpush1.bf16.msra.mxu0 0
  %1448 = vmatprep.subr.bf16.mxu0 0
  %1449 = vmatpush1.bf16.msra.mxu0 0
  %1450 = vmatprep.subr.bf16.mxu0 0
  %1451 = vmatpush1.bf16.msra.mxu0 0
  %1452 = vmatprep.subr.bf16.mxu0 0
  %1453 = vmatpush1.bf16.msra.mxu0 0
  %1454 = vmatprep.subr.bf16.mxu0 0
  %1455 = vmatpush1.bf16.msra.mxu0 %v1436
  %1456 = vmatprep.subr.bf16.mxu0 0
  %1457 = vmatpush1.bf16.msra.mxu0 %v1435
  %1458 = vmatprep.subr.bf16.mxu0 0
  %1459 = vmatpush2.bf16.msra.mxu0 0
  %1460 = vmatprep.subr.bf16.mxu0 0
  %1461 = vmatpush2.bf16.msra.mxu0 0
  %1462 = vmatprep.subr.bf16.mxu0 0
  %1463 = vmatpush2.bf16.msra.mxu0 0
  %1464 = vmatprep.subr.bf16.mxu0 0
  %1465 = vmatpush2.bf16.msra.mxu0 0
  %1466 = vmatprep.subr.bf16.mxu0 0
  %1467 = vmatpush2.bf16.msra.mxu0 0
  %1468 = vmatprep.subr.bf16.mxu0 0
  %1469 = vmatpush2.bf16.msra.mxu0 0
  %1470 = vmatprep.subr.bf16.mxu0 0
  %1471 = vmatpush2.bf16.msra.mxu0 0
  %1472 = vmatprep.subr.bf16.mxu0 0
  %1473 = vmatpush2.bf16.msra.mxu0 0
  %1474 = vmatprep.mubr.bf16.mxu0 0
  %1475 = vmatmul.mubr.bf16.gmra.mxu0 %v1440
  %v1476 = vpop.f32.mrf.mxu0
  %v1477 = vadd.f32 %v1426, %v1476
  %v1478 = vpop.f32.mrf.mxu0
  %v1479 = vpop.f32.mrf.mxu0
  %v1480 = vpop.f32.mrf.mxu0
  %1481 = vdwg.mxu0
  %v1482 = vmax.f32 %v1477, 0.0
  %v1483 = vpack.c.bf16 %v1482, %v1482
  %v1484 = vlaneseq
  %v1485 = vshrl.u32 %v1484, 7
  %v1486 = vsub.s32 1, %v1485
  %v1487 = vrot.slane %v1408, %v1486
  %v1492 = vunpack.c.l.b16 %v1414
  %v1493 = vunpack.c.l.b16 %v1415
  %v1494 = vunpack.c.l.b16 %v1416
  %v1495 = vunpack.c.l.b16 %v1417
  %v1496 = vpack.c.b16 %v1493, %v1492
  %v1497 = vpack.c.b16 %v1495, %v1494
  %v1501 = vsel %vm49, %v1483, 0
  %1503 = vmatprep.subr.bf16.mxu0 0
  %1504 = vmatpush1.bf16.msra.mxu0 0
  %1505 = vmatprep.subr.bf16.mxu0 0
  %1506 = vmatpush1.bf16.msra.mxu0 0
  %1507 = vmatprep.subr.bf16.mxu0 0
  %1508 = vmatpush1.bf16.msra.mxu0 0
  %1509 = vmatprep.subr.bf16.mxu0 0
  %1510 = vmatpush1.bf16.msra.mxu0 0
  %1511 = vmatprep.subr.bf16.mxu0 0
  %1512 = vmatpush1.bf16.msra.mxu0 0
  %1513 = vmatprep.subr.bf16.mxu0 0
  %1514 = vmatpush1.bf16.msra.mxu0 0
  %1515 = vmatprep.subr.bf16.mxu0 0
  %1516 = vmatpush1.bf16.msra.mxu0 %v1497
  %1517 = vmatprep.subr.bf16.mxu0 0
  %1518 = vmatpush1.bf16.msra.mxu0 %v1496
  %1519 = vmatprep.subr.bf16.mxu0 0
  %1520 = vmatpush2.bf16.msra.mxu0 0
  %1521 = vmatprep.subr.bf16.mxu0 0
  %1522 = vmatpush2.bf16.msra.mxu0 0
  %1523 = vmatprep.subr.bf16.mxu0 0
  %1524 = vmatpush2.bf16.msra.mxu0 0
  %1525 = vmatprep.subr.bf16.mxu0 0
  %1526 = vmatpush2.bf16.msra.mxu0 0
  %1527 = vmatprep.subr.bf16.mxu0 0
  %1528 = vmatpush2.bf16.msra.mxu0 0
  %1529 = vmatprep.subr.bf16.mxu0 0
  %1530 = vmatpush2.bf16.msra.mxu0 0
  %1531 = vmatprep.subr.bf16.mxu0 0
  %1532 = vmatpush2.bf16.msra.mxu0 0
  %1533 = vmatprep.subr.bf16.mxu0 0
  %1534 = vmatpush2.bf16.msra.mxu0 0
  %1535 = vmatprep.mubr.bf16.mxu0 0
  %1536 = vmatmul.mubr.bf16.gmra.mxu0 %v1501
  %v1537 = vpop.f32.mrf.mxu0
  %v1538 = vadd.f32 %v1487, %v1537
  %v1539 = vpop.f32.mrf.mxu0
  %v1540 = vpop.f32.mrf.mxu0
  %v1541 = vpop.f32.mrf.mxu0
  %1542 = vdwg.mxu0
  %v1543 = vmax.f32 %v1538, 0.0
  %v1544 = vpack.c.bf16 %v1543, %v1543
  %v1545 = vlaneseq
  %v1546 = vshrl.u32 %v1545, 7
  %v1547 = vsub.s32 2, %v1546
  %v1548 = vrot.slane %v1408, %v1547
  %v1553 = vunpack.c.l.b16 %v1418
  %v1554 = vunpack.c.l.b16 %v1419
  %v1555 = vunpack.c.l.b16 %v1420
  %v1556 = vunpack.c.l.b16 %v1421
  %v1557 = vpack.c.b16 %v1554, %v1553
  %v1558 = vpack.c.b16 %v1556, %v1555
  %v1562 = vsel %vm49, %v1544, 0
  %1564 = vmatprep.subr.bf16.mxu0 0
  %1565 = vmatpush1.bf16.msra.mxu0 0
  %1566 = vmatprep.subr.bf16.mxu0 0
  %1567 = vmatpush1.bf16.msra.mxu0 0
  %1568 = vmatprep.subr.bf16.mxu0 0
  %1569 = vmatpush1.bf16.msra.mxu0 0
  %1570 = vmatprep.subr.bf16.mxu0 0
  %1571 = vmatpush1.bf16.msra.mxu0 0
  %1572 = vmatprep.subr.bf16.mxu0 0
  %1573 = vmatpush1.bf16.msra.mxu0 0
  %1574 = vmatprep.subr.bf16.mxu0 0
  %1575 = vmatpush1.bf16.msra.mxu0 0
  %1576 = vmatprep.subr.bf16.mxu0 0
  %1577 = vmatpush1.bf16.msra.mxu0 %v1558
  %1578 = vmatprep.subr.bf16.mxu0 0
  %1579 = vmatpush1.bf16.msra.mxu0 %v1557
  %1580 = vmatprep.subr.bf16.mxu0 0
  %1581 = vmatpush2.bf16.msra.mxu0 0
  %1582 = vmatprep.subr.bf16.mxu0 0
  %1583 = vmatpush2.bf16.msra.mxu0 0
  %1584 = vmatprep.subr.bf16.mxu0 0
  %1585 = vmatpush2.bf16.msra.mxu0 0
  %1586 = vmatprep.subr.bf16.mxu0 0
  %1587 = vmatpush2.bf16.msra.mxu0 0
  %1588 = vmatprep.subr.bf16.mxu0 0
  %1589 = vmatpush2.bf16.msra.mxu0 0
  %1590 = vmatprep.subr.bf16.mxu0 0
  %1591 = vmatpush2.bf16.msra.mxu0 0
  %1592 = vmatprep.subr.bf16.mxu0 0
  %1593 = vmatpush2.bf16.msra.mxu0 0
  %1594 = vmatprep.subr.bf16.mxu0 0
  %1595 = vmatpush2.bf16.msra.mxu0 0
  %1596 = vmatprep.mubr.bf16.mxu0 0
  %1597 = vmatmul.mubr.bf16.gmra.mxu0 %v1562
  %v1598 = vpop.f32.mrf.mxu0
  %v1599 = vadd.f32 %v1548, %v1598
  %v1600 = vpop.f32.mrf.mxu0
  %v1601 = vpop.f32.mrf.mxu0
  %v1602 = vpop.f32.mrf.mxu0
  %1603 = vdwg.mxu0
  %v1604 = vmax.f32 %v1599, 0.0
  %v1605 = vlaneseq
  %v1606 = vshrl.u32 %v1605, 7
  %v1607 = vsub.s32 4, %v1606
  %v1608 = vrot.slane %v1408, %v1607
  %v1609 = vmul.f32 %v1604, %v1608
  %v1610 = vsel %vm49, %v1609, 0.0
  %1611 = vadd.xlane.f32.xlu0 %v1610
  %v1612 = vpop.xlane.xlu0 %1611
  %v1613 = vlaneseq
  %v1614 = vshrl.u32 %v1613, 7
  %v1615 = vsub.s32 5, %v1614
  %v1616 = vrot.slane %v1408, %v1615
  %v1617 = vadd.f32 %v1612, %v1616
  %v1618 = vadd.f32 %v1406, %v1617
  %vm1619 = vcmask 7168
  %1620 = vst.msk [vmem:[%s4] sm:$0xff] %vm1619, %v1618
  // Predicated region
  $region18: #{tpu_custom_call.1} parent=0 // pred_check
    _
  $region19: #{tpu_custom_call.1} parent=0 // pred_check_branch
    %1622 = sbr.rel (0) target = $region21
  $region20: #{tpu_custom_call.1} parent=0 // pred_region
    _
  $region21: #{tpu_custom_call.1} parent=0 // pred_fallthru
    _
  // Predicated region
  $region22: #{tpu_custom_call.1} parent=0 // pred_check
    _
  $region23: #{tpu_custom_call.1} parent=0 // pred_check_branch
    %1624 = sbr.rel (0) target = $region25
  $region24: #{tpu_custom_call.1} parent=0 // pred_region
    _
  $region25: #{tpu_custom_call.1} parent=0 // pred_fallthru
    _

</llo_original>
